<compile_context>
chip_gen: v5e
topology: v5e:2x2
jax: 0.10.0
libtpu: 0.0.40
codegen_flags: <defaults>
</compile_context>

<pallas_src>
import functools

import jax
import jax.numpy as jnp
import numpy as np
from jax.experimental import pallas as pl
from jax.experimental.pallas import tpu as pltpu


# ----------------------------- Pallas kernels ------------------------------ #

def _layer_norm(x, gamma, beta, eps=1e-5):
    mu = jnp.mean(x, axis=-1, keepdims=True)
    var = jnp.mean(jnp.square(x - mu), axis=-1, keepdims=True)
    return (x - mu) * jax.lax.rsqrt(var + eps) * gamma + beta


def _msda_proj_kernel(src_ref, pos_ref, wv_ref, bv_ref, woa_ref, boa_ref, hmask_ref,
                      val_ref, off_ref, attn_ref, *,
                      n_heads, lp, n_off, compute_dtype):
    """Per (batch, seq-tile): value proj + fused offsets|attn proj + per-head softmax."""
    src = src_ref[...]                        # (TQ, D) f32
    q = src + pos_ref[...]                    # query = src + pos (f32 VPU add)

    # value = value_proj(src)   (MXU in compute_dtype, f32 accumulate)
    val = jnp.dot(src.astype(compute_dtype), wv_ref[...],
                  preferred_element_type=jnp.float32) + bv_ref[...]
    val_ref[...] = val.astype(val_ref.dtype)

    # fused [sampling_offsets | attention_weights] = Linear(q)   (one wide MXU matmul)
    oa = jnp.dot(q.astype(compute_dtype), woa_ref[...],
                 preferred_element_type=jnp.float32) + boa_ref[...]
    off_ref[...] = oa[:, :n_off].astype(off_ref.dtype)

    # Per-head-stable softmax over lp = n_levels*n_points lanes, vectorized:
    #   * per-head max via masked full-width reduces (unrolled over <=8 heads, head lane
    #     selectors are rows of the resident head_mask input — no iota/int-div per step)
    #   * one full-width exp
    #   * per-head sums via block-diagonal ones matmul (single MXU op), exact division
    #     (denominator >= 1 after per-head max subtraction, no clamp needed).
    logits = oa[:, n_off:]                    # (TQ, M*lp) f32
    hmask = hmask_ref[...]                    # (ALP, ALP) block-diagonal 0/1, f32
    neg = jnp.float32(-1e30)
    m_b = jnp.zeros_like(logits)
    for h in range(n_heads):                  # unrolled, n_heads <= 8
        sel = hmask[h * lp:h * lp + 1, :] > 0.0          # (1, ALP) lanes of head h
        mh = jnp.max(jnp.where(sel, logits, neg), axis=-1, keepdims=True)
        m_b = m_b + jnp.where(sel, mh, 0.0)
    e = jnp.exp(logits - m_b)
    denom = jnp.dot(e, hmask, preferred_element_type=jnp.float32)
    attn_ref[...] = (e / denom).astype(attn_ref.dtype)


def _msda_out_ffn_kernel(src_ref, agg_ref, wout_ref, bout_ref,
                         g1_ref, be1_ref, w1_ref, b1_ref, w2_ref, b2_ref,
                         g2_ref, be2_ref, out_ref, *, compute_dtype, ffn_chunk):
    """Per (batch, seq-tile): output_proj + LN1 + FFN (F-chunked) + LN2."""
    src2 = jnp.dot(agg_ref[...].astype(compute_dtype), wout_ref[...],
                   preferred_element_type=jnp.float32) + bout_ref[...]

    # residual + norm1   (dropout1 = identity, eval mode)
    x = src_ref[...].astype(jnp.float32) + src2
    x = _layer_norm(x, g1_ref[...], be1_ref[...])

    # FFN: linear2(relu(linear1(x))) + residual, norm2.  Chunked along F so the (TQ, F)
    # f32 intermediate stays small when TQ is large (v7x 64 MiB VMEM).
    xc = x.astype(compute_dtype)
    F = w1_ref.shape[1]
    y = x + b2_ref[...]
    for c0 in range(0, F, ffn_chunk):
        c1 = min(c0 + ffn_chunk, F)
        h = jnp.maximum(jnp.dot(xc, w1_ref[:, c0:c1],
                                preferred_element_type=jnp.float32) + b1_ref[:, c0:c1], 0.0)
        y = y + jnp.dot(h.astype(compute_dtype), w2_ref[c0:c1, :],
                        preferred_element_type=jnp.float32)
    out_ref[...] = _layer_norm(y, g2_ref[...], be2_ref[...]).astype(out_ref.dtype)


# ----------------------------- pallas_call wrappers ------------------------ #

def _choose_tq(Lq, target):
    """Sequence tile: multiple of 16 (works for f32 and bf16 sublane tiling)."""
    tq = min(int(target), max(int(Lq), 16))
    return max(16, (tq // 16) * 16)


def _pad_seq(x, tq):
    pad = (-x.shape[1]) % tq
    if pad == 0:
        return x
    widths = [(0, 0)] * x.ndim
    widths[1] = (0, pad)
    return jnp.pad(x, widths)


def _weight_spec(shape, single_buffer):
    """Constant-index-map (resident) weight block.  single_buffer=True -> pl.Buffered(1)
    (no double-buffering of never-changing weight blocks; VMEM saver on v7x)."""
    imap = lambda b, s: (0,) * len(shape)
    if single_buffer:
        return pl.BlockSpec(shape, imap, pipeline_mode=pl.Buffered(1))
    return pl.BlockSpec(shape, imap)


def _compiler_params(cfg):
    return pltpu.CompilerParams(
        dimension_semantics=("parallel", "parallel"),
        vmem_limit_bytes=int(cfg.get('vmem_limit_mb', 48)) * 1024 * 1024)


def msda_projections(src_p, pos_p, prep, cfg, tq):
    """Kernel A on the padded sequence.  Returns (value, offsets, attn) at length Lp."""
    B, Lp, D = src_p.shape
    M, L, P = cfg['n_heads'], cfg['n_levels'], cfg['n_points']
    OFF, ALP = M * L * P * 2, M * L * P
    cdt = cfg.get('compute_dtype', jnp.float32)
    sb = bool(cfg.get('single_buffer_weights', False))
    grid = (B, Lp // tq)

    seq = lambda last: pl.BlockSpec((None, tq, last), lambda b, s: (b, s, 0))
    wsp = lambda shape: _weight_spec(shape, sb)
    kernel = functools.partial(_msda_proj_kernel, n_heads=M, lp=L * P, n_off=OFF,
                               compute_dtype=cdt)

    return pl.pallas_call(
        kernel,
        grid=grid,
        in_specs=[seq(D), seq(D),
                  wsp((D, D)), wsp((1, D)),
                  wsp((D, OFF + ALP)), wsp((1, OFF + ALP)),
                  wsp((ALP, ALP))],
        out_specs=[seq(D), seq(OFF), seq(ALP)],
        out_shape=[jax.ShapeDtypeStruct((B, Lp, D), cdt),        # value
                   jax.ShapeDtypeStruct((B, Lp, OFF), jnp.float32),  # offsets (f32: exact locs)
                   jax.ShapeDtypeStruct((B, Lp, ALP), cdt)],     # attn (bf16 in production)
        compiler_params=_compiler_params(cfg),
    )(src_p, pos_p, prep['w_value'], prep['b_value'], prep['w_oa'], prep['b_oa'],
      prep['head_mask'])


def msda_output_ffn(src_p, agg, prep, cfg, tq):
    """Kernel B on the padded sequence.  Returns the layer output at length Lp (f32)."""
    B, Lp, D = src_p.shape
    F = cfg['d_ffn']
    cdt = cfg.get('compute_dtype', jnp.float32)
    sb = bool(cfg.get('single_buffer_weights', False))
    fc = int(cfg.get('ffn_chunk') or F)
    fc = min(fc, F)
    grid = (B, Lp // tq)

    seq = lambda last: pl.BlockSpec((None, tq, last), lambda b, s: (b, s, 0))
    wsp = lambda shape: _weight_spec(shape, sb)
    kernel = functools.partial(_msda_out_ffn_kernel, compute_dtype=cdt, ffn_chunk=fc)

    return pl.pallas_call(
        kernel,
        grid=grid,
        in_specs=[seq(D), seq(D),
                  wsp((D, D)), wsp((1, D)),
                  wsp((1, D)), wsp((1, D)),
                  wsp((D, F)), wsp((1, F)),
                  wsp((F, D)), wsp((1, D)),
                  wsp((1, D)), wsp((1, D))],
        out_specs=seq(D),
        out_shape=jax.ShapeDtypeStruct((B, Lp, D), jnp.float32),
        compiler_params=_compiler_params(cfg),
    )(src_p, agg.astype(cdt),
      prep['w_out'], prep['b_out'],
      prep['ln1_g'], prep['ln1_b'],
      prep['w_ffn1'], prep['b_ffn1'],
      prep['w_ffn2'], prep['b_ffn2'],
      prep['ln2_g'], prep['ln2_b'])


# ----------------------------- parameter prep (outside jit) ---------------- #

def prepare_msda_params(params, cfg):
    """One-time prep: fuse [w_offset|w_attn], cast MXU-side weights to the compute dtype,
    and build the block-diagonal per-head softmax mask.  Call once, outside jit."""
    cdt = cfg.get('compute_dtype', jnp.float32)
    M, L, P = cfg['n_heads'], cfg['n_levels'], cfg['n_points']
    lp = L * P
    seg = np.arange(M * lp) // lp
    head_mask = jnp.asarray((seg[:, None] == seg[None, :]).astype(np.float32))
    return {
        'w_value': params['w_value'].astype(cdt), 'b_value': params['b_value'],
        'w_oa': jnp.concatenate([params['w_offset'], params['w_attn']], axis=1).astype(cdt),
        'b_oa': jnp.concatenate([params['b_offset'], params['b_attn']], axis=1),
        'head_mask': head_mask,
        'w_out': params['w_out'].astype(cdt), 'b_out': params['b_out'],
        'ln1_g': params['ln1_g'], 'ln1_b': params['ln1_b'],
        'w_ffn1': params['w_ffn1'].astype(cdt), 'b_ffn1': params['b_ffn1'],
        'w_ffn2': params['w_ffn2'].astype(cdt), 'b_ffn2': params['b_ffn2'],
        'ln2_g': params['ln2_g'], 'ln2_b': params['ln2_b'],
    }


# ----------------------------- JAX glue ------------------------------------ #

def _ms_deform_sample_agg(value, spatial_shapes, sampling_locations, attn):
    """Bilinear grid-sample (align_corners=False, zero padding) with the attention-weighted
    (level, point) reduction folded in — never materializes a (B, Lq, L*P, D) tensor.
    value: (B, Lin_padded, M, Dh); sampling_locations: (B, Lq, M, L, P, 2) (x, y) in [0,1];
    attn: (B, Lq, M, L, P).  Returns (B, Lq, M*Dh) head-major."""
    # TODO(synk): data-dependent gather kept in plain JAX (no Pallas gather kernel yet);
    # for real DETR shapes this dominates wall clock and is the next kernel to write.
    B, _, M, Dh = value.shape
    Lq = sampling_locations.shape[1]
    acc = jnp.zeros((B, Lq, M, Dh), jnp.float32)
    start = 0
    for lid, (H, W) in enumerate(spatial_shapes):
        v_l = value[:, start:start + H * W]               # (B, HW, M, Dh)
        start += H * W
        loc = sampling_locations[:, :, :, lid]            # (B, Lq, M, P, 2)
        w_attn = attn[:, :, :, lid].astype(jnp.float32)   # (B, Lq, M, P)
        x = loc[..., 0] * W - 0.5
        y = loc[..., 1] * H - 0.5
        x0 = jnp.floor(x)
        y0 = jnp.floor(y)
        x1 = x0 + 1.0
        y1 = y0 + 1.0
        wx1 = x - x0
        wx0 = 1.0 - wx1
        wy1 = y - y0
        wy0 = 1.0 - wy1

        b_idx = jnp.arange(B)[:, None, None, None]
        m_idx = jnp.arange(M)[None, None, :, None]

        def corner(ix, iy, w):
            valid = ((ix >= 0) & (ix < W) & (iy >= 0) & (iy < H)).astype(jnp.float32)
            ixc = jnp.clip(ix, 0, W - 1).astype(jnp.int32)
            iyc = jnp.clip(iy, 0, H - 1).astype(jnp.int32)
            idx = iyc * W + ixc                           # (B, Lq, M, P)
            g = v_l[b_idx, idx, m_idx]                    # (B, Lq, M, P, Dh)
            cw = (valid * w * w_attn)[..., None]          # fold attn weight into corner
            return jnp.sum(g.astype(jnp.float32) * cw, axis=3)   # (B, Lq, M, Dh)

        acc = (acc + corner(x0, y0, wx0 * wy0) + corner(x1, y0, wx1 * wy0)
               + corner(x0, y1, wx0 * wy1) + corner(x1, y1, wx1 * wy1))
    return acc.reshape(B, Lq, M * Dh)


def deformable_encoder_layer(src, pos, reference_points, prep, *, spatial_shapes, cfg):
    """forward(src, pos, reference_points, spatial_shapes, ..., tgt=None), eval mode."""
    B, Lq, D = src.shape
    M, L, P = cfg['n_heads'], cfg['n_levels'], cfg['n_points']
    Dh = D // M
    tq = _choose_tq(Lq, cfg.get('tq', 1024))

    # Pad once; carry the padded length Lp through the whole pipeline (no inter-kernel
    # [:Lq] slice copies).  Padded rows produce finite garbage and are dropped at the end.
    src_p = _pad_seq(src, tq)
    pos_p = _pad_seq(pos, tq)
    ref_p = _pad_seq(reference_points, tq)
    Lp = src_p.shape[1]

    # ----- Kernel A: value / fused offsets|attn projections + per-head softmax -----
    value, offsets, attn = msda_projections(src_p, pos_p, prep, cfg, tq)
    # TODO(synk): padding_mask masked_fill of `value` not implemented (encoder passes None).

    value = value.reshape(B, Lp, M, Dh)
    offsets = offsets.reshape(B, Lp, M, L, P, 2)
    # offset_normalizer = stack([W, H], -1)
    normalizer = jnp.array([[w, h] for (h, w) in spatial_shapes], dtype=jnp.float32)
    sampling_locations = (ref_p[:, :, None, :, None, :]
                          + offsets / normalizer[None, None, None, :, None, :])
    attn5 = attn.reshape(B, Lp, M, L, P)

    # bilinear sampling with attn-weighted (L, P) reduction folded in -> (B, Lp, D)
    agg = _ms_deform_sample_agg(value, spatial_shapes, sampling_locations, attn5)

    # ----- Kernel B: output_proj + LN1 + FFN + LN2 -----
    out = msda_output_ffn(src_p, agg, prep, cfg, tq)
    return out[:, :Lq] if Lp != Lq else out


# ----------------------------- reference (pure JAX) ------------------------- #

def _ms_deform_sample_full(value, spatial_shapes, sampling_locations):
    """Un-fused bilinear sampling (reference only): returns (B, Lq, M, L*P, Dh)."""
    B, _, M, Dh = value.shape
    _, Lq, _, L, P, _ = sampling_locations.shape
    outs = []
    start = 0
    for lid, (H, W) in enumerate(spatial_shapes):
        v_l = value[:, start:start + H * W]
        start += H * W
        loc = sampling_locations[:, :, :, lid]
        x = loc[..., 0] * W - 0.5
        y = loc[..., 1] * H - 0.5
        x0 = jnp.floor(x); y0 = jnp.floor(y)
        x1 = x0 + 1.0; y1 = y0 + 1.0
        wx1 = x - x0; wx0 = 1.0 - wx1
        wy1 = y - y0; wy0 = 1.0 - wy1
        b_idx = jnp.arange(B)[:, None, None, None]
        m_idx = jnp.arange(M)[None, None, :, None]

        def corner(ix, iy, w):
            valid = ((ix >= 0) & (ix < W) & (iy >= 0) & (iy < H)).astype(value.dtype)
            ixc = jnp.clip(ix, 0, W - 1).astype(jnp.int32)
            iyc = jnp.clip(iy, 0, H - 1).astype(jnp.int32)
            idx = iyc * W + ixc
            g = v_l[b_idx, idx, m_idx]
            return g * (valid * w)[..., None]

        outs.append(corner(x0, y0, wx0 * wy0) + corner(x1, y0, wx1 * wy0)
                    + corner(x0, y1, wx0 * wy1) + corner(x1, y1, wx1 * wy1))
    sampled = jnp.stack(outs, axis=3)
    return sampled.reshape(B, Lq, M, L * P, Dh)


def _reference_layer(src, pos, reference_points, spatial_shapes, params, cfg):
    D, M, L, P = cfg['d_model'], cfg['n_heads'], cfg['n_levels'], cfg['n_points']
    Dh = D // M
    B, Lq, _ = src.shape
    q = src + pos
    value = src @ params['w_value'] + params['b_value']
    offsets = q @ params['w_offset'] + params['b_offset']
    logits = q @ params['w_attn'] + params['b_attn']
    attn = jax.nn.softmax(logits.reshape(B, Lq, M, L * P), axis=-1)
    value = value.reshape(B, Lq, M, Dh)
    offsets = offsets.reshape(B, Lq, M, L, P, 2)
    normalizer = jnp.array([[w, h] for (h, w) in spatial_shapes], dtype=jnp.float32)
    loc = reference_points[:, :, None, :, None, :] + offsets / normalizer[None, None, None, :, None, :]
    sampled = _ms_deform_sample_full(value, spatial_shapes, loc)
    agg = jnp.sum(sampled * attn[..., None], axis=3)
    agg = agg.reshape(B, Lq, D)
    src2 = agg @ params['w_out'] + params['b_out']

    def ln(x, g, b):
        mu = jnp.mean(x, -1, keepdims=True)
        var = jnp.mean((x - mu) ** 2, -1, keepdims=True)
        return (x - mu) / jnp.sqrt(var + 1e-5) * g + b

    x = ln(src + src2, params['ln1_g'], params['ln1_b'])
    h = jnp.maximum(x @ params['w_ffn1'] + params['b_ffn1'], 0.0)
    y = x + h @ params['w_ffn2'] + params['b_ffn2']
    return ln(y, params['ln2_g'], params['ln2_b'])


# ----------------------------- setup & main --------------------------------- #

def init_params(key, cfg):
    D, F = cfg['d_model'], cfg['d_ffn']
    M, L, P = cfg['n_heads'], cfg['n_levels'], cfg['n_points']
    OFF, ALP = M * L * P * 2, M * L * P
    ks = jax.random.split(key, 12)
    w = lambda k, s: 0.02 * jax.random.normal(k, s, dtype=jnp.float32)
    return {
        'w_value': w(ks[0], (D, D)), 'b_value': w(ks[1], (1, D)),
        'w_offset': w(ks[2], (D, OFF)), 'b_offset': w(ks[3], (1, OFF)),
        'w_attn': w(ks[4], (D, ALP)), 'b_attn': w(ks[5], (1, ALP)),
        'w_out': w(ks[6], (D, D)), 'b_out': w(ks[7], (1, D)),
        'ln1_g': jnp.ones((1, D), jnp.float32), 'ln1_b': jnp.zeros((1, D), jnp.float32),
        'w_ffn1': w(ks[8], (D, F)), 'b_ffn1': w(ks[9], (1, F)),
        'w_ffn2': w(ks[10], (F, D)), 'b_ffn2': w(ks[11], (1, D)),
        'ln2_g': jnp.ones((1, D), jnp.float32), 'ln2_b': jnp.zeros((1, D), jnp.float32),
    }


def make_reference_points(spatial_shapes, B):
    refs = []
    for (H, W) in spatial_shapes:
        ry, rx = jnp.meshgrid((jnp.arange(H, dtype=jnp.float32) + 0.5) / H,
                              (jnp.arange(W, dtype=jnp.float32) + 0.5) / W,
                              indexing='ij')
        refs.append(jnp.stack([rx.reshape(-1), ry.reshape(-1)], axis=-1))
    ref = jnp.concatenate(refs, axis=0)                       # (Len, 2)
    L = len(spatial_shapes)
    return jnp.broadcast_to(ref[None, :, None, :], (B, ref.shape[0], L, 2))


if __name__ == "__main__":
    # Small demo shapes (real DETR: d_model=256, d_ffn=1024, n_heads=8, n_levels=4,
    # n_points=4; tq ~1024-2048 with vmem_limit_mb ~64-100 on v5e/v6e, tq ~1024 with
    # vmem_limit_mb <= 48 + single_buffer_weights + ffn_chunk=512 on v7x).  tq=16 here so
    # the (B, Lq-tile) grid actually pipelines: grid = (2, 5).
    cfg = dict(d_model=32, d_ffn=64, n_heads=4, n_levels=2, n_points=2,
               tq=16, compute_dtype=jnp.float32, vmem_limit_mb=48)
    spatial_shapes = ((8, 8), (4, 4))                         # multi-scale feature maps
    B = 2
    Len = sum(h * w for h, w in spatial_shapes)               # 80

    key = jax.random.PRNGKey(0)
    k_src, k_pos, k_par = jax.random.split(key, 3)
    src = jax.random.normal(k_src, (B, Len, cfg['d_model']), dtype=jnp.float32)
    pos = jax.random.normal(k_pos, (B, Len, cfg['d_model']), dtype=jnp.float32)
    params = init_params(k_par, cfg)
    reference_points = make_reference_points(spatial_shapes, B)

    ref = jax.block_until_ready(
        _reference_layer(src, pos, reference_points, spatial_shapes, params, cfg))

    # ---- exact-math path (compute_dtype = f32): tight-tolerance correctness check ----
    prep_f32 = prepare_msda_params(params, cfg)
    fwd = jax.jit(functools.partial(deformable_encoder_layer,
                                    spatial_shapes=spatial_shapes, cfg=cfg))
    out = jax.block_until_ready(fwd(src, pos, reference_points, prep_f32))
    assert out.shape == (B, Len, cfg['d_model'])
    assert bool(jnp.all(jnp.isfinite(out)))
    np.testing.assert_allclose(np.asarray(out), np.asarray(ref), rtol=5e-3, atol=5e-3)

    # ---- production path: bf16 MXU boundary on all generations (incl. v5e), bf16 attn
    #      stream, F-chunked FFN, single-buffered resident weights (v7x VMEM saver). ----
    cfg_prod = dict(cfg, compute_dtype=jnp.bfloat16, ffn_chunk=32,
                    single_buffer_weights=True)
    try:
        prep_prod = prepare_msda_params(params, cfg_prod)
        fwd_prod = jax.jit(functools.partial(deformable_encoder_layer,
                                             spatial_shapes=spatial_shapes, cfg=cfg_prod))
        out_prod = jax.block_until_ready(fwd_prod(src, pos, reference_points, prep_prod))
    except Exception:
        # pl.Buffered(1) not supported by this jax build: fall back to default buffering.
        cfg_prod = dict(cfg_prod, single_buffer_weights=False)
        prep_prod = prepare_msda_params(params, cfg_prod)
        fwd_prod = jax.jit(functools.partial(deformable_encoder_layer,
                                             spatial_shapes=spatial_shapes, cfg=cfg_prod))
        out_prod = jax.block_until_ready(fwd_prod(src, pos, reference_points, prep_prod))
    assert out_prod.shape == (B, Len, cfg['d_model'])
    assert bool(jnp.all(jnp.isfinite(out_prod)))
    np.testing.assert_allclose(np.asarray(out_prod, np.float32), np.asarray(ref),
                               rtol=1e-1, atol=1e-1)

    print("KERNEL_OK")
</pallas_src>

<mosaic_0001>
module attributes {stable_mosaic.version = 11 : i64} {
  func.func @_msda_proj_kernel(%arg0: i32, %arg1: i32, %arg2: memref<1x16x32xf32, #tpu.memory_space<vmem>>, %arg3: memref<1x16x32xf32, #tpu.memory_space<vmem>>, %arg4: memref<32x32xf32, #tpu.memory_space<vmem>>, %arg5: memref<1x32xf32, #tpu.memory_space<vmem>>, %arg6: memref<32x48xf32, #tpu.memory_space<vmem>>, %arg7: memref<1x48xf32, #tpu.memory_space<vmem>>, %arg8: memref<16x16xf32, #tpu.memory_space<vmem>>, %arg9: memref<1x16x32xf32, #tpu.memory_space<vmem>>, %arg10: memref<1x16x32xf32, #tpu.memory_space<vmem>>, %arg11: memref<1x16x16xf32, #tpu.memory_space<vmem>>) attributes {dimension_semantics = [#tpu.dimension_semantics<parallel>, #tpu.dimension_semantics<parallel>], iteration_bounds = array<i64: 2, 5>, scalar_prefetch = 0 : i64, scratch_operands = 0 : i64, tpu.core_type = #tpu.core_type<tc>, window_params = [{transform_indices = @transform_0, window_bounds = array<i64: 1, 16, 32>}, {transform_indices = @transform_1, window_bounds = array<i64: 1, 16, 32>}, {pipeline_mode = #tpu.pipeline_mode<synchronous>, transform_indices = @transform_2, window_bounds = array<i64: 32, 32>}, {pipeline_mode = #tpu.pipeline_mode<synchronous>, transform_indices = @transform_3, window_bounds = array<i64: 1, 32>}, {pipeline_mode = #tpu.pipeline_mode<synchronous>, transform_indices = @transform_4, window_bounds = array<i64: 32, 48>}, {pipeline_mode = #tpu.pipeline_mode<synchronous>, transform_indices = @transform_5, window_bounds = array<i64: 1, 48>}, {pipeline_mode = #tpu.pipeline_mode<synchronous>, transform_indices = @transform_6, window_bounds = array<i64: 16, 16>}, {transform_indices = @transform_7, window_bounds = array<i64: 1, 16, 32>}, {transform_indices = @transform_8, window_bounds = array<i64: 1, 16, 32>}, {transform_indices = @transform_9, window_bounds = array<i64: 1, 16, 16>}]} {
    %c0 = arith.constant 0 : index
    %c0_0 = arith.constant 0 : index
    %c0_1 = arith.constant 0 : index
    %0 = vector.load %arg2[%c0, %c0_0, %c0_1] : memref<1x16x32xf32, #tpu.memory_space<vmem>>, vector<1x16x32xf32>
    %1 = vector.shape_cast %0 : vector<1x16x32xf32> to vector<16x32xf32>
    %c0_2 = arith.constant 0 : index
    %c0_3 = arith.constant 0 : index
    %c0_4 = arith.constant 0 : index
    %2 = vector.load %arg3[%c0_2, %c0_3, %c0_4] : memref<1x16x32xf32, #tpu.memory_space<vmem>>, vector<1x16x32xf32>
    %3 = vector.shape_cast %2 : vector<1x16x32xf32> to vector<16x32xf32>
    %4 = arith.addf %1, %3 : vector<16x32xf32>
    %c0_5 = arith.constant 0 : index
    %c0_6 = arith.constant 0 : index
    %5 = vector.load %arg4[%c0_5, %c0_6] : memref<32x32xf32, #tpu.memory_space<vmem>>, vector<32x32xf32>
    %cst = arith.constant dense<0.000000e+00> : vector<16x32xf32>
    %6 = tpu.matmul %1, %5, %cst {dimension_numbers = #tpu.dot_dimension_numbers<[1], [0], [0], [1], [0, 0, 1, 1], [], []>} : vector<16x32xf32>, vector<32x32xf32>, vector<16x32xf32> -> vector<16x32xf32>
    %c0_7 = arith.constant 0 : index
    %c0_8 = arith.constant 0 : index
    %7 = vector.load %arg5[%c0_7, %c0_8] : memref<1x32xf32, #tpu.memory_space<vmem>>, vector<1x32xf32>
    %8 = vector.broadcast %7 : vector<1x32xf32> to vector<16x32xf32>
    %9 = arith.addf %6, %8 : vector<16x32xf32>
    %c0_9 = arith.constant 0 : index
    %c0_10 = arith.constant 0 : index
    %c0_11 = arith.constant 0 : index
    %10 = vector.load %arg9[%c0_9, %c0_10, %c0_11] : memref<1x16x32xf32, #tpu.memory_space<vmem>>, vector<1x16x32xf32>
    %11 = vector.shape_cast %10 : vector<1x16x32xf32> to vector<16x32xf32>
    %12 = vector.shape_cast %9 : vector<16x32xf32> to vector<1x16x32xf32>
    tpu.vector_store %arg9[%c0_9, %c0_10, %c0_11], %12 {strides = array<i32>} : memref<1x16x32xf32, #tpu.memory_space<vmem>>, vector<1x16x32xf32>,
    %c0_12 = arith.constant 0 : index
    %c0_13 = arith.constant 0 : index
    %13 = vector.load %arg6[%c0_12, %c0_13] : memref<32x48xf32, #tpu.memory_space<vmem>>, vector<32x48xf32>
    %cst_14 = arith.constant dense<0.000000e+00> : vector<16x48xf32>
    %14 = tpu.matmul %4, %13, %cst_14 {dimension_numbers = #tpu.dot_dimension_numbers<[1], [0], [0], [1], [0, 0, 1, 1], [], []>} : vector<16x32xf32>, vector<32x48xf32>, vector<16x48xf32> -> vector<16x48xf32>
    %c0_15 = arith.constant 0 : index
    %c0_16 = arith.constant 0 : index
    %15 = vector.load %arg7[%c0_15, %c0_16] : memref<1x48xf32, #tpu.memory_space<vmem>>, vector<1x48xf32>
    %16 = vector.broadcast %15 : vector<1x48xf32> to vector<16x48xf32>
    %17 = arith.addf %14, %16 : vector<16x48xf32>
    %18 = vector.extract_strided_slice %17 {offsets = [0, 0], sizes = [16, 32], strides = [1, 1]} : vector<16x48xf32> to vector<16x32xf32>
    %c0_17 = arith.constant 0 : index
    %c0_18 = arith.constant 0 : index
    %c0_19 = arith.constant 0 : index
    %19 = vector.load %arg10[%c0_17, %c0_18, %c0_19] : memref<1x16x32xf32, #tpu.memory_space<vmem>>, vector<1x16x32xf32>
    %20 = vector.shape_cast %19 : vector<1x16x32xf32> to vector<16x32xf32>
    %21 = vector.shape_cast %18 : vector<16x32xf32> to vector<1x16x32xf32>
    tpu.vector_store %arg10[%c0_17, %c0_18, %c0_19], %21 {strides = array<i32>} : memref<1x16x32xf32, #tpu.memory_space<vmem>>, vector<1x16x32xf32>,
    %22 = vector.extract_strided_slice %17 {offsets = [0, 32], sizes = [16, 16], strides = [1, 1]} : vector<16x48xf32> to vector<16x16xf32>
    %c0_20 = arith.constant 0 : index
    %c0_21 = arith.constant 0 : index
    %23 = vector.load %arg8[%c0_20, %c0_21] : memref<16x16xf32, #tpu.memory_space<vmem>>, vector<16x16xf32>
    %cst_22 = arith.constant 0.000000e+00 : f32
    %24 = vector.broadcast %cst_22 : f32 to vector<16x16xf32>
    %25 = vector.extract_strided_slice %23 {offsets = [0, 0], sizes = [1, 16], strides = [1, 1]} : vector<16x16xf32> to vector<1x16xf32>
    %cst_23 = arith.constant 0.000000e+00 : f32
    %26 = vector.broadcast %cst_23 : f32 to vector<1x16xf32>
    %27 = arith.cmpf ogt, %25, %26 : vector<1x16xf32>
    %cst_24 = arith.constant -1.000000e+30 : f32
    %28 = vector.shape_cast %27 : vector<1x16xi1> to vector<1x16xi1>
    %29 = vector.broadcast %28 : vector<1x16xi1> to vector<16x16xi1>
    %30 = vector.broadcast %cst_24 : f32 to vector<16x16xf32>
    %31 = arith.select %29, %22, %30 : vector<16x16xi1>, vector<16x16xf32>
    %cst_25 = arith.constant dense<0xFF800000> : vector<16xf32>
    %32 = vector.multi_reduction <maximumf>, %31, %cst_25 [1] : vector<16x16xf32> to vector<16xf32>
    %33 = vector.shape_cast %32 : vector<16xf32> to vector<16x1xf32>
    %cst_26 = arith.constant 0.000000e+00 : f32
    %34 = vector.shape_cast %27 : vector<1x16xi1> to vector<1x16xi1>
    %35 = vector.broadcast %34 : vector<1x16xi1> to vector<16x16xi1>
    %36 = vector.shape_cast %33 : vector<16x1xf32> to vector<16x1xf32>
    %37 = vector.broadcast %36 : vector<16x1xf32> to vector<16x16xf32>
    %38 = vector.broadcast %cst_26 : f32 to vector<16x16xf32>
    %39 = arith.select %35, %37, %38 : vector<16x16xi1>, vector<16x16xf32>
    %40 = arith.addf %24, %39 : vector<16x16xf32>
    %41 = vector.extract_strided_slice %23 {offsets = [4, 0], sizes = [1, 16], strides = [1, 1]} : vector<16x16xf32> to vector<1x16xf32>
    %cst_27 = arith.constant 0.000000e+00 : f32
    %42 = vector.broadcast %cst_27 : f32 to vector<1x16xf32>
    %43 = arith.cmpf ogt, %41, %42 : vector<1x16xf32>
    %cst_28 = arith.constant -1.000000e+30 : f32
    %44 = vector.shape_cast %43 : vector<1x16xi1> to vector<1x16xi1>
    %45 = vector.broadcast %44 : vector<1x16xi1> to vector<16x16xi1>
    %46 = vector.broadcast %cst_28 : f32 to vector<16x16xf32>
    %47 = arith.select %45, %22, %46 : vector<16x16xi1>, vector<16x16xf32>
    %cst_29 = arith.constant dense<0xFF800000> : vector<16xf32>
    %48 = vector.multi_reduction <maximumf>, %47, %cst_29 [1] : vector<16x16xf32> to vector<16xf32>
    %49 = vector.shape_cast %48 : vector<16xf32> to vector<16x1xf32>
    %cst_30 = arith.constant 0.000000e+00 : f32
    %50 = vector.shape_cast %43 : vector<1x16xi1> to vector<1x16xi1>
    %51 = vector.broadcast %50 : vector<1x16xi1> to vector<16x16xi1>
    %52 = vector.shape_cast %49 : vector<16x1xf32> to vector<16x1xf32>
    %53 = vector.broadcast %52 : vector<16x1xf32> to vector<16x16xf32>
    %54 = vector.broadcast %cst_30 : f32 to vector<16x16xf32>
    %55 = arith.select %51, %53, %54 : vector<16x16xi1>, vector<16x16xf32>
    %56 = arith.addf %40, %55 : vector<16x16xf32>
    %57 = vector.extract_strided_slice %23 {offsets = [8, 0], sizes = [1, 16], strides = [1, 1]} : vector<16x16xf32> to vector<1x16xf32>
    %cst_31 = arith.constant 0.000000e+00 : f32
    %58 = vector.broadcast %cst_31 : f32 to vector<1x16xf32>
    %59 = arith.cmpf ogt, %57, %58 : vector<1x16xf32>
    %cst_32 = arith.constant -1.000000e+30 : f32
    %60 = vector.shape_cast %59 : vector<1x16xi1> to vector<1x16xi1>
    %61 = vector.broadcast %60 : vector<1x16xi1> to vector<16x16xi1>
    %62 = vector.broadcast %cst_32 : f32 to vector<16x16xf32>
    %63 = arith.select %61, %22, %62 : vector<16x16xi1>, vector<16x16xf32>
    %cst_33 = arith.constant dense<0xFF800000> : vector<16xf32>
    %64 = vector.multi_reduction <maximumf>, %63, %cst_33 [1] : vector<16x16xf32> to vector<16xf32>
    %65 = vector.shape_cast %64 : vector<16xf32> to vector<16x1xf32>
    %cst_34 = arith.constant 0.000000e+00 : f32
    %66 = vector.shape_cast %59 : vector<1x16xi1> to vector<1x16xi1>
    %67 = vector.broadcast %66 : vector<1x16xi1> to vector<16x16xi1>
    %68 = vector.shape_cast %65 : vector<16x1xf32> to vector<16x1xf32>
    %69 = vector.broadcast %68 : vector<16x1xf32> to vector<16x16xf32>
    %70 = vector.broadcast %cst_34 : f32 to vector<16x16xf32>
    %71 = arith.select %67, %69, %70 : vector<16x16xi1>, vector<16x16xf32>
    %72 = arith.addf %56, %71 : vector<16x16xf32>
    %73 = vector.extract_strided_slice %23 {offsets = [12, 0], sizes = [1, 16], strides = [1, 1]} : vector<16x16xf32> to vector<1x16xf32>
    %cst_35 = arith.constant 0.000000e+00 : f32
    %74 = vector.broadcast %cst_35 : f32 to vector<1x16xf32>
    %75 = arith.cmpf ogt, %73, %74 : vector<1x16xf32>
    %cst_36 = arith.constant -1.000000e+30 : f32
    %76 = vector.shape_cast %75 : vector<1x16xi1> to vector<1x16xi1>
    %77 = vector.broadcast %76 : vector<1x16xi1> to vector<16x16xi1>
    %78 = vector.broadcast %cst_36 : f32 to vector<16x16xf32>
    %79 = arith.select %77, %22, %78 : vector<16x16xi1>, vector<16x16xf32>
    %cst_37 = arith.constant dense<0xFF800000> : vector<16xf32>
    %80 = vector.multi_reduction <maximumf>, %79, %cst_37 [1] : vector<16x16xf32> to vector<16xf32>
    %81 = vector.shape_cast %80 : vector<16xf32> to vector<16x1xf32>
    %cst_38 = arith.constant 0.000000e+00 : f32
    %82 = vector.shape_cast %75 : vector<1x16xi1> to vector<1x16xi1>
    %83 = vector.broadcast %82 : vector<1x16xi1> to vector<16x16xi1>
    %84 = vector.shape_cast %81 : vector<16x1xf32> to vector<16x1xf32>
    %85 = vector.broadcast %84 : vector<16x1xf32> to vector<16x16xf32>
    %86 = vector.broadcast %cst_38 : f32 to vector<16x16xf32>
    %87 = arith.select %83, %85, %86 : vector<16x16xi1>, vector<16x16xf32>
    %88 = arith.addf %72, %87 : vector<16x16xf32>
    %89 = arith.subf %22, %88 : vector<16x16xf32>
    %90 = math.exp %89 : vector<16x16xf32>
    %cst_39 = arith.constant dense<0.000000e+00> : vector<16x16xf32>
    %91 = tpu.matmul %90, %23, %cst_39 {dimension_numbers = #tpu.dot_dimension_numbers<[1], [0], [0], [1], [0, 0, 1, 1], [], []>} : vector<16x16xf32>, vector<16x16xf32>, vector<16x16xf32> -> vector<16x16xf32>
    %92 = arith.divf %90, %91 : vector<16x16xf32>
    %c0_40 = arith.constant 0 : index
    %c0_41 = arith.constant 0 : index
    %c0_42 = arith.constant 0 : index
    %93 = vector.load %arg11[%c0_40, %c0_41, %c0_42] : memref<1x16x16xf32, #tpu.memory_space<vmem>>, vector<1x16x16xf32>
    %94 = vector.shape_cast %93 : vector<1x16x16xf32> to vector<16x16xf32>
    %95 = vector.shape_cast %92 : vector<16x16xf32> to vector<1x16x16xf32>
    tpu.vector_store %arg11[%c0_40, %c0_41, %c0_42], %95 {strides = array<i32>} : memref<1x16x16xf32, #tpu.memory_space<vmem>>, vector<1x16x16xf32>,
    return
  }
  func.func @transform_0(%arg0: i32, %arg1: i32) -> (i32, i32, i32) {
    %c0_i32 = arith.constant 0 : i32
    %c0_i32_0 = arith.constant 0 : i32
    return %arg0, %arg1, %c0_i32 : i32, i32, i32
  }
  func.func @transform_1(%arg0: i32, %arg1: i32) -> (i32, i32, i32) {
    %c0_i32 = arith.constant 0 : i32
    %c0_i32_0 = arith.constant 0 : i32
    return %arg0, %arg1, %c0_i32 : i32, i32, i32
  }
  func.func @transform_2(%arg0: i32, %arg1: i32) -> (i32, i32) {
    %c0_i32 = arith.constant 0 : i32
    %c0_i32_0 = arith.constant 0 : i32
    %c0_i32_1 = arith.constant 0 : i32
    return %c0_i32, %c0_i32_0 : i32, i32
  }
  func.func @transform_3(%arg0: i32, %arg1: i32) -> (i32, i32) {
    %c0_i32 = arith.constant 0 : i32
    %c0_i32_0 = arith.constant 0 : i32
    %c0_i32_1 = arith.constant 0 : i32
    return %c0_i32, %c0_i32_0 : i32, i32
  }
  func.func @transform_4(%arg0: i32, %arg1: i32) -> (i32, i32) {
    %c0_i32 = arith.constant 0 : i32
    %c0_i32_0 = arith.constant 0 : i32
    %c0_i32_1 = arith.constant 0 : i32
    return %c0_i32, %c0_i32_0 : i32, i32
  }
  func.func @transform_5(%arg0: i32, %arg1: i32) -> (i32, i32) {
    %c0_i32 = arith.constant 0 : i32
    %c0_i32_0 = arith.constant 0 : i32
    %c0_i32_1 = arith.constant 0 : i32
    return %c0_i32, %c0_i32_0 : i32, i32
  }
  func.func @transform_6(%arg0: i32, %arg1: i32) -> (i32, i32) {
    %c0_i32 = arith.constant 0 : i32
    %c0_i32_0 = arith.constant 0 : i32
    %c0_i32_1 = arith.constant 0 : i32
    return %c0_i32, %c0_i32_0 : i32, i32
  }
  func.func @transform_7(%arg0: i32, %arg1: i32) -> (i32, i32, i32) {
    %c0_i32 = arith.constant 0 : i32
    %c0_i32_0 = arith.constant 0 : i32
    return %arg0, %arg1, %c0_i32 : i32, i32, i32
  }
  func.func @transform_8(%arg0: i32, %arg1: i32) -> (i32, i32, i32) {
    %c0_i32 = arith.constant 0 : i32
    %c0_i32_0 = arith.constant 0 : i32
    return %arg0, %arg1, %c0_i32 : i32, i32, i32
  }
  func.func @transform_9(%arg0: i32, %arg1: i32) -> (i32, i32, i32) {
    %c0_i32 = arith.constant 0 : i32
    %c0_i32_0 = arith.constant 0 : i32
    return %arg0, %arg1, %c0_i32 : i32, i32, i32
  }
}

module attributes {stable_mosaic.version = 11 : i64} {
  func.func @_msda_out_ffn_kernel(%arg0: i32, %arg1: i32, %arg2: memref<1x16x32xf32, #tpu.memory_space<vmem>>, %arg3: memref<1x16x32xf32, #tpu.memory_space<vmem>>, %arg4: memref<32x32xf32, #tpu.memory_space<vmem>>, %arg5: memref<1x32xf32, #tpu.memory_space<vmem>>, %arg6: memref<1x32xf32, #tpu.memory_space<vmem>>, %arg7: memref<1x32xf32, #tpu.memory_space<vmem>>, %arg8: memref<32x64xf32, #tpu.memory_space<vmem>>, %arg9: memref<1x64xf32, #tpu.memory_space<vmem>>, %arg10: memref<64x32xf32, #tpu.memory_space<vmem>>, %arg11: memref<1x32xf32, #tpu.memory_space<vmem>>, %arg12: memref<1x32xf32, #tpu.memory_space<vmem>>, %arg13: memref<1x32xf32, #tpu.memory_space<vmem>>, %arg14: memref<1x16x32xf32, #tpu.memory_space<vmem>>) attributes {dimension_semantics = [#tpu.dimension_semantics<parallel>, #tpu.dimension_semantics<parallel>], iteration_bounds = array<i64: 2, 5>, scalar_prefetch = 0 : i64, scratch_operands = 0 : i64, tpu.core_type = #tpu.core_type<tc>, window_params = [{transform_indices = @transform_0, window_bounds = array<i64: 1, 16, 32>}, {transform_indices = @transform_1, window_bounds = array<i64: 1, 16, 32>}, {pipeline_mode = #tpu.pipeline_mode<synchronous>, transform_indices = @transform_2, window_bounds = array<i64: 32, 32>}, {pipeline_mode = #tpu.pipeline_mode<synchronous>, transform_indices = @transform_3, window_bounds = array<i64: 1, 32>}, {pipeline_mode = #tpu.pipeline_mode<synchronous>, transform_indices = @transform_4, window_bounds = array<i64: 1, 32>}, {pipeline_mode = #tpu.pipeline_mode<synchronous>, transform_indices = @transform_5, window_bounds = array<i64: 1, 32>}, {pipeline_mode = #tpu.pipeline_mode<synchronous>, transform_indices = @transform_6, window_bounds = array<i64: 32, 64>}, {pipeline_mode = #tpu.pipeline_mode<synchronous>, transform_indices = @transform_7, window_bounds = array<i64: 1, 64>}, {pipeline_mode = #tpu.pipeline_mode<synchronous>, transform_indices = @transform_8, window_bounds = array<i64: 64, 32>}, {pipeline_mode = #tpu.pipeline_mode<synchronous>, transform_indices = @transform_9, window_bounds = array<i64: 1, 32>}, {pipeline_mode = #tpu.pipeline_mode<synchronous>, transform_indices = @transform_10, window_bounds = array<i64: 1, 32>}, {pipeline_mode = #tpu.pipeline_mode<synchronous>, transform_indices = @transform_11, window_bounds = array<i64: 1, 32>}, {transform_indices = @transform_12, window_bounds = array<i64: 1, 16, 32>}]} {
    %c0 = arith.constant 0 : index
    %c0_0 = arith.constant 0 : index
    %c0_1 = arith.constant 0 : index
    %0 = vector.load %arg3[%c0, %c0_0, %c0_1] : memref<1x16x32xf32, #tpu.memory_space<vmem>>, vector<1x16x32xf32>
    %1 = vector.shape_cast %0 : vector<1x16x32xf32> to vector<16x32xf32>
    %c0_2 = arith.constant 0 : index
    %c0_3 = arith.constant 0 : index
    %2 = vector.load %arg4[%c0_2, %c0_3] : memref<32x32xf32, #tpu.memory_space<vmem>>, vector<32x32xf32>
    %cst = arith.constant dense<0.000000e+00> : vector<16x32xf32>
    %3 = tpu.matmul %1, %2, %cst {dimension_numbers = #tpu.dot_dimension_numbers<[1], [0], [0], [1], [0, 0, 1, 1], [], []>} : vector<16x32xf32>, vector<32x32xf32>, vector<16x32xf32> -> vector<16x32xf32>
    %c0_4 = arith.constant 0 : index
    %c0_5 = arith.constant 0 : index
    %4 = vector.load %arg5[%c0_4, %c0_5] : memref<1x32xf32, #tpu.memory_space<vmem>>, vector<1x32xf32>
    %5 = vector.broadcast %4 : vector<1x32xf32> to vector<16x32xf32>
    %6 = arith.addf %3, %5 : vector<16x32xf32>
    %c0_6 = arith.constant 0 : index
    %c0_7 = arith.constant 0 : index
    %c0_8 = arith.constant 0 : index
    %7 = vector.load %arg2[%c0_6, %c0_7, %c0_8] : memref<1x16x32xf32, #tpu.memory_space<vmem>>, vector<1x16x32xf32>
    %8 = vector.shape_cast %7 : vector<1x16x32xf32> to vector<16x32xf32>
    %9 = arith.addf %8, %6 : vector<16x32xf32>
    %c0_9 = arith.constant 0 : index
    %c0_10 = arith.constant 0 : index
    %10 = vector.load %arg6[%c0_9, %c0_10] : memref<1x32xf32, #tpu.memory_space<vmem>>, vector<1x32xf32>
    %c0_11 = arith.constant 0 : index
    %c0_12 = arith.constant 0 : index
    %11 = vector.load %arg7[%c0_11, %c0_12] : memref<1x32xf32, #tpu.memory_space<vmem>>, vector<1x32xf32>
    %cst_13 = arith.constant dense<0.000000e+00> : vector<16xf32>
    %12 = vector.multi_reduction <add>, %9, %cst_13 [1] : vector<16x32xf32> to vector<16xf32>
    %13 = vector.shape_cast %12 : vector<16xf32> to vector<16x1xf32>
    %cst_14 = arith.constant 3.200000e+01 : f32
    %14 = vector.broadcast %cst_14 : f32 to vector<16x1xf32>
    %15 = arith.divf %13, %14 : vector<16x1xf32>
    %16 = vector.broadcast %15 : vector<16x1xf32> to vector<16x32xf32>
    %17 = arith.subf %9, %16 : vector<16x32xf32>
    %18 = arith.mulf %17, %17 : vector<16x32xf32>
    %cst_15 = arith.constant dense<0.000000e+00> : vector<16xf32>
    %19 = vector.multi_reduction <add>, %18, %cst_15 [1] : vector<16x32xf32> to vector<16xf32>
    %20 = vector.shape_cast %19 : vector<16xf32> to vector<16x1xf32>
    %cst_16 = arith.constant 3.200000e+01 : f32
    %21 = vector.broadcast %cst_16 : f32 to vector<16x1xf32>
    %22 = arith.divf %20, %21 : vector<16x1xf32>
    %23 = vector.broadcast %15 : vector<16x1xf32> to vector<16x32xf32>
    %24 = arith.subf %9, %23 : vector<16x32xf32>
    %cst_17 = arith.constant 9.99999974E-6 : f32
    %25 = vector.broadcast %cst_17 : f32 to vector<16x1xf32>
    %26 = arith.addf %22, %25 : vector<16x1xf32>
    %27 = math.rsqrt %26 : vector<16x1xf32>
    %28 = vector.broadcast %27 : vector<16x1xf32> to vector<16x32xf32>
    %29 = arith.mulf %24, %28 : vector<16x32xf32>
    %30 = vector.broadcast %10 : vector<1x32xf32> to vector<16x32xf32>
    %31 = arith.mulf %29, %30 : vector<16x32xf32>
    %32 = vector.broadcast %11 : vector<1x32xf32> to vector<16x32xf32>
    %33 = arith.addf %31, %32 : vector<16x32xf32>
    %c0_18 = arith.constant 0 : index
    %c0_19 = arith.constant 0 : index
    %34 = vector.load %arg11[%c0_18, %c0_19] : memref<1x32xf32, #tpu.memory_space<vmem>>, vector<1x32xf32>
    %35 = vector.broadcast %34 : vector<1x32xf32> to vector<16x32xf32>
    %36 = arith.addf %33, %35 : vector<16x32xf32>
    %c0_20 = arith.constant 0 : index
    %c0_21 = arith.constant 0 : index
    %37 = vector.load %arg8[%c0_20, %c0_21] : memref<32x64xf32, #tpu.memory_space<vmem>>, vector<32x64xf32>
    %cst_22 = arith.constant dense<0.000000e+00> : vector<16x64xf32>
    %38 = tpu.matmul %33, %37, %cst_22 {dimension_numbers = #tpu.dot_dimension_numbers<[1], [0], [0], [1], [0, 0, 1, 1], [], []>} : vector<16x32xf32>, vector<32x64xf32>, vector<16x64xf32> -> vector<16x64xf32>
    %c0_23 = arith.constant 0 : index
    %c0_24 = arith.constant 0 : index
    %39 = vector.load %arg9[%c0_23, %c0_24] : memref<1x64xf32, #tpu.memory_space<vmem>>, vector<1x64xf32>
    %40 = vector.broadcast %39 : vector<1x64xf32> to vector<16x64xf32>
    %41 = arith.addf %38, %40 : vector<16x64xf32>
    %cst_25 = arith.constant 0.000000e+00 : f32
    %42 = vector.broadcast %cst_25 : f32 to vector<16x64xf32>
    %43 = arith.maximumf %41, %42 : vector<16x64xf32>
    %c0_26 = arith.constant 0 : index
    %c0_27 = arith.constant 0 : index
    %44 = vector.load %arg10[%c0_26, %c0_27] : memref<64x32xf32, #tpu.memory_space<vmem>>, vector<64x32xf32>
    %cst_28 = arith.constant dense<0.000000e+00> : vector<16x32xf32>
    %45 = tpu.matmul %43, %44, %cst_28 {dimension_numbers = #tpu.dot_dimension_numbers<[1], [0], [0], [1], [0, 0, 1, 1], [], []>} : vector<16x64xf32>, vector<64x32xf32>, vector<16x32xf32> -> vector<16x32xf32>
    %46 = arith.addf %36, %45 : vector<16x32xf32>
    %c0_29 = arith.constant 0 : index
    %c0_30 = arith.constant 0 : index
    %47 = vector.load %arg12[%c0_29, %c0_30] : memref<1x32xf32, #tpu.memory_space<vmem>>, vector<1x32xf32>
    %c0_31 = arith.constant 0 : index
    %c0_32 = arith.constant 0 : index
    %48 = vector.load %arg13[%c0_31, %c0_32] : memref<1x32xf32, #tpu.memory_space<vmem>>, vector<1x32xf32>
    %cst_33 = arith.constant dense<0.000000e+00> : vector<16xf32>
    %49 = vector.multi_reduction <add>, %46, %cst_33 [1] : vector<16x32xf32> to vector<16xf32>
    %50 = vector.shape_cast %49 : vector<16xf32> to vector<16x1xf32>
    %cst_34 = arith.constant 3.200000e+01 : f32
    %51 = vector.broadcast %cst_34 : f32 to vector<16x1xf32>
    %52 = arith.divf %50, %51 : vector<16x1xf32>
    %53 = vector.broadcast %52 : vector<16x1xf32> to vector<16x32xf32>
    %54 = arith.subf %46, %53 : vector<16x32xf32>
    %55 = arith.mulf %54, %54 : vector<16x32xf32>
    %cst_35 = arith.constant dense<0.000000e+00> : vector<16xf32>
    %56 = vector.multi_reduction <add>, %55, %cst_35 [1] : vector<16x32xf32> to vector<16xf32>
    %57 = vector.shape_cast %56 : vector<16xf32> to vector<16x1xf32>
    %cst_36 = arith.constant 3.200000e+01 : f32
    %58 = vector.broadcast %cst_36 : f32 to vector<16x1xf32>
    %59 = arith.divf %57, %58 : vector<16x1xf32>
    %60 = vector.broadcast %52 : vector<16x1xf32> to vector<16x32xf32>
    %61 = arith.subf %46, %60 : vector<16x32xf32>
    %cst_37 = arith.constant 9.99999974E-6 : f32
    %62 = vector.broadcast %cst_37 : f32 to vector<16x1xf32>
    %63 = arith.addf %59, %62 : vector<16x1xf32>
    %64 = math.rsqrt %63 : vector<16x1xf32>
    %65 = vector.broadcast %64 : vector<16x1xf32> to vector<16x32xf32>
    %66 = arith.mulf %61, %65 : vector<16x32xf32>
    %67 = vector.broadcast %47 : vector<1x32xf32> to vector<16x32xf32>
    %68 = arith.mulf %66, %67 : vector<16x32xf32>
    %69 = vector.broadcast %48 : vector<1x32xf32> to vector<16x32xf32>
    %70 = arith.addf %68, %69 : vector<16x32xf32>
    %c0_38 = arith.constant 0 : index
    %c0_39 = arith.constant 0 : index
    %c0_40 = arith.constant 0 : index
    %71 = vector.load %arg14[%c0_38, %c0_39, %c0_40] : memref<1x16x32xf32, #tpu.memory_space<vmem>>, vector<1x16x32xf32>
    %72 = vector.shape_cast %71 : vector<1x16x32xf32> to vector<16x32xf32>
    %73 = vector.shape_cast %70 : vector<16x32xf32> to vector<1x16x32xf32>
    tpu.vector_store %arg14[%c0_38, %c0_39, %c0_40], %73 {strides = array<i32>} : memref<1x16x32xf32, #tpu.memory_space<vmem>>, vector<1x16x32xf32>,
    return
  }
  func.func @transform_0(%arg0: i32, %arg1: i32) -> (i32, i32, i32) {
    %c0_i32 = arith.constant 0 : i32
    %c0_i32_0 = arith.constant 0 : i32
    return %arg0, %arg1, %c0_i32 : i32, i32, i32
  }
  func.func @transform_1(%arg0: i32, %arg1: i32) -> (i32, i32, i32) {
    %c0_i32 = arith.constant 0 : i32
    %c0_i32_0 = arith.constant 0 : i32
    return %arg0, %arg1, %c0_i32 : i32, i32, i32
  }
  func.func @transform_2(%arg0: i32, %arg1: i32) -> (i32, i32) {
    %c0_i32 = arith.constant 0 : i32
    %c0_i32_0 = arith.constant 0 : i32
    %c0_i32_1 = arith.constant 0 : i32
    return %c0_i32, %c0_i32_0 : i32, i32
  }
  func.func @transform_3(%arg0: i32, %arg1: i32) -> (i32, i32) {
    %c0_i32 = arith.constant 0 : i32
    %c0_i32_0 = arith.constant 0 : i32
    %c0_i32_1 = arith.constant 0 : i32
    return %c0_i32, %c0_i32_0 : i32, i32
  }
  func.func @transform_4(%arg0: i32, %arg1: i32) -> (i32, i32) {
    %c0_i32 = arith.constant 0 : i32
    %c0_i32_0 = arith.constant 0 : i32
    %c0_i32_1 = arith.constant 0 : i32
    return %c0_i32, %c0_i32_0 : i32, i32
  }
  func.func @transform_5(%arg0: i32, %arg1: i32) -> (i32, i32) {
    %c0_i32 = arith.constant 0 : i32
    %c0_i32_0 = arith.constant 0 : i32
    %c0_i32_1 = arith.constant 0 : i32
    return %c0_i32, %c0_i32_0 : i32, i32
  }
  func.func @transform_6(%arg0: i32, %arg1: i32) -> (i32, i32) {
    %c0_i32 = arith.constant 0 : i32
    %c0_i32_0 = arith.constant 0 : i32
    %c0_i32_1 = arith.constant 0 : i32
    return %c0_i32, %c0_i32_0 : i32, i32
  }
  func.func @transform_7(%arg0: i32, %arg1: i32) -> (i32, i32) {
    %c0_i32 = arith.constant 0 : i32
    %c0_i32_0 = arith.constant 0 : i32
    %c0_i32_1 = arith.constant 0 : i32
    return %c0_i32, %c0_i32_0 : i32, i32
  }
  func.func @transform_8(%arg0: i32, %arg1: i32) -> (i32, i32) {
    %c0_i32 = arith.constant 0 : i32
    %c0_i32_0 = arith.constant 0 : i32
    %c0_i32_1 = arith.constant 0 : i32
    return %c0_i32, %c0_i32_0 : i32, i32
  }
  func.func @transform_9(%arg0: i32, %arg1: i32) -> (i32, i32) {
    %c0_i32 = arith.constant 0 : i32
    %c0_i32_0 = arith.constant 0 : i32
    %c0_i32_1 = arith.constant 0 : i32
    return %c0_i32, %c0_i32_0 : i32, i32
  }
  func.func @transform_10(%arg0: i32, %arg1: i32) -> (i32, i32) {
    %c0_i32 = arith.constant 0 : i32
    %c0_i32_0 = arith.constant 0 : i32
    %c0_i32_1 = arith.constant 0 : i32
    return %c0_i32, %c0_i32_0 : i32, i32
  }
  func.func @transform_11(%arg0: i32, %arg1: i32) -> (i32, i32) {
    %c0_i32 = arith.constant 0 : i32
    %c0_i32_0 = arith.constant 0 : i32
    %c0_i32_1 = arith.constant 0 : i32
    return %c0_i32, %c0_i32_0 : i32, i32
  }
  func.func @transform_12(%arg0: i32, %arg1: i32) -> (i32, i32, i32) {
    %c0_i32 = arith.constant 0 : i32
    %c0_i32_0 = arith.constant 0 : i32
    return %arg0, %arg1, %c0_i32 : i32, i32, i32
  }
}

</mosaic_0001>

<llo_original>
// kernel: deformable_encoder_layer.2
$region0: #{deformable_encoder_layer.2}
  #allocation0 [shape = 'u32[]', space=smem, size = 0x4, offset = 0x4, fixed_abs, tag = 'smem constant byte address 0x4 - core index']
  #allocation1 [shape = 'u32[72,128]{1,0:T(1,128)}', space=vmem, size = 0x9000, scoped, tag = 'internal scratch']
  %s0 = inlined_call_operand.vmem [shape: f32[2,80,32], index: 0, kind: input, shape index: {}]
  %s1 = inlined_call_operand.vmem [shape: f32[2,80,32], index: 1, kind: input, shape index: {}]
  %s2 = inlined_call_operand.vmem [shape: f32[32,32], index: 2, kind: input, shape index: {}]
  %s3 = inlined_call_operand.vmem [shape: f32[1,32], index: 3, kind: input, shape index: {}]
  %s4 = inlined_call_operand.vmem [shape: f32[32,48], index: 4, kind: input, shape index: {}]
  %s5 = inlined_call_operand.vmem [shape: f32[1,48], index: 5, kind: input, shape index: {}]
  %s6 = inlined_call_operand.vmem [shape: f32[16,16], index: 6, kind: input, shape index: {}]
  %s7 = inlined_call_operand.vmem [shape: f32[2,80,32], index: 7, kind: output, shape index: {0}]
  %s8 = inlined_call_operand.vmem [shape: f32[2,80,32], index: 8, kind: output, shape index: {1}]
  %s9 = inlined_call_operand.vmem [shape: f32[2,80,16], index: 9, kind: output, shape index: {2}]
  %10 = xla_tuple %s7, %s8, %s9
  %s11 = sld [smem:[#allocation0]]
  $region77: #{deformable_encoder_layer.2} parent=0
    _
  %s13 = ssub.s32 1, %s11
  %s14 = scalar_select 0, %s13, %s11
  loop: start=0, step=1, limit=12
  $region2: #{deformable_encoder_layer.2} parent=0 // loop_pre_header
    _
  $region3: #{deformable_encoder_layer.2} parent=0 // loop_header
    %s16 = sphi 0, %s20
    %p17 = scmp.ge.s32.totalorder %s16, 12
    %s23 = sphi 0, %s35
    %s24 = sphi 0, %s31
    %s25 = sphi 0, %s23
    %s26 = sphi 0, %s24
    %s27 = sphi 0, %s25
    %s28 = sphi 0, %s26
    %s40 = sphi 0, %s42
    %s43 = sphi 0, %s40
    %s44 = sphi 0, %s43
    %s60 = sphi 0, %s44
    %s68 = sphi 0, %s70
    %s71 = sphi 0, %s68
    %s72 = sphi 0, %s71
    %s88 = sphi 0, %s72
    %s92 = sphi 0, %s92
    %s94 = sphi 0, %s92
    %s95 = sphi 0, %s94
    %s109 = sphi 0, %s95
    %s113 = sphi 0, %s113
    %s115 = sphi 0, %s113
    %s116 = sphi 0, %s115
    %s130 = sphi 0, %s116
    %s134 = sphi 0, %s134
    %s136 = sphi 0, %s134
    %s137 = sphi 0, %s136
    %s151 = sphi 0, %s137
    %s155 = sphi 0, %s155
    %s157 = sphi 0, %s155
    %s158 = sphi 0, %s157
    %s172 = sphi 0, %s158
    %s176 = sphi 0, %s176
    %s178 = sphi 0, %s176
    %s179 = sphi 0, %s178
    %s193 = sphi 0, %s179
    %s201 = sphi 0, %s203
    %s204 = sphi 0, %s201
    %s205 = sphi 0, %s204
    %s221 = sphi 0, %s205
    %s229 = sphi 0, %s231
    %s232 = sphi 0, %s229
    %s233 = sphi 0, %s232
    %s249 = sphi 0, %s233
    %s257 = sphi 0, %s259
    %s260 = sphi 0, %s257
    %s261 = sphi 0, %s260
    %s277 = sphi 0, %s261
  $region4: #{deformable_encoder_layer.2} parent=0 // loop_header_branch
    %19 = sbr.rel (%p17) target = $region8
  $region5: #{deformable_encoder_layer.2} parent=0 // loop_body
    %s21 = ssub.s32 %s16, 1
    %s22 = ssub.s32 %s16, 2
    %s29 = sadd.s32 1, %s24
    %p30 = scmp.ge.s32.totalorder %s29, 5
    %s31 = scalar_select %p30, 0, %s29
    %s32 = sadd.s32 1, %s23
    %s33 = scalar_select %p30, %s32, %s23
    %p34 = scmp.ge.s32.totalorder %s33, 2
    %s35 = scalar_select %p34, 0, %s33
    %s36 = ssub.s32 %s23, %s35
    %s37 = ssub.s32 %s24, %s31
    %s38 = sor.u32 %s36, %s37
    %p39 = scmp.eq.s32.totalorder %s38, 0
    %s41 = sadd.s32 %s40, 1
    %s42 = scalar_select %p39, %s40, %s41
    %p45 = pneg %p39
    %p46 = scmp.eq.s32.totalorder %s16, 9
    %p47 = por %p45, %p46
    %p48 = scmp.ne.s32.totalorder %s40, %s43
    %p49 = scmp.eq.s32.totalorder %s16, 0
    %p50 = por %p48, %p49
    %p51 = scmp.ne.s32.totalorder %s40, %s43
    %p52 = scmp.eq.s32.totalorder %s21, 9
    %p53 = por %p51, %p52
    %p54 = scmp.ne.s32.totalorder %s43, %s44
    %p55 = scmp.eq.s32.totalorder %s21, 0
    %p56 = por %p54, %p55
    %p57 = scmp.ne.s32.totalorder %s43, %s44
    %p58 = scmp.eq.s32.totalorder %s22, 9
    %p59 = por %p57, %p58
    %p61 = scmp.ne.s32.totalorder %s44, %s60
    %p62 = scmp.eq.s32.totalorder %s22, 0
    %p63 = por %p61, %p62
    %s64 = ssub.s32 %s23, %s35
    %s65 = ssub.s32 %s24, %s31
    %s66 = sor.u32 %s64, %s65
    %p67 = scmp.eq.s32.totalorder %s66, 0
    %s69 = sadd.s32 %s68, 1
    %s70 = scalar_select %p67, %s68, %s69
    %p73 = pneg %p67
    %p74 = scmp.eq.s32.totalorder %s16, 9
    %p75 = por %p73, %p74
    %p76 = scmp.ne.s32.totalorder %s68, %s71
    %p77 = scmp.eq.s32.totalorder %s16, 0
    %p78 = por %p76, %p77
    %p79 = scmp.ne.s32.totalorder %s68, %s71
    %p80 = scmp.eq.s32.totalorder %s21, 9
    %p81 = por %p79, %p80
    %p82 = scmp.ne.s32.totalorder %s71, %s72
    %p83 = scmp.eq.s32.totalorder %s21, 0
    %p84 = por %p82, %p83
    %p85 = scmp.ne.s32.totalorder %s71, %s72
    %p86 = scmp.eq.s32.totalorder %s22, 9
    %p87 = por %p85, %p86
    %p89 = scmp.ne.s32.totalorder %s72, %s88
    %p90 = scmp.eq.s32.totalorder %s22, 0
    %p91 = por %p89, %p90
    %s93 = sadd.s32 %s92, 1
    %p96 = scmp.eq.s32.totalorder %s16, 9
    %p97 = scmp.ne.s32.totalorder %s92, %s94
    %p98 = scmp.eq.s32.totalorder %s16, 0
    %p99 = por %p97, %p98
    %p100 = scmp.ne.s32.totalorder %s92, %s94
    %p101 = scmp.eq.s32.totalorder %s21, 9
    %p102 = por %p100, %p101
    %p103 = scmp.ne.s32.totalorder %s94, %s95
    %p104 = scmp.eq.s32.totalorder %s21, 0
    %p105 = por %p103, %p104
    %p106 = scmp.ne.s32.totalorder %s94, %s95
    %p107 = scmp.eq.s32.totalorder %s22, 9
    %p108 = por %p106, %p107
    %p110 = scmp.ne.s32.totalorder %s95, %s109
    %p111 = scmp.eq.s32.totalorder %s22, 0
    %p112 = por %p110, %p111
    %s114 = sadd.s32 %s113, 1
    %p117 = scmp.eq.s32.totalorder %s16, 9
    %p118 = scmp.ne.s32.totalorder %s113, %s115
    %p119 = scmp.eq.s32.totalorder %s16, 0
    %p120 = por %p118, %p119
    %p121 = scmp.ne.s32.totalorder %s113, %s115
    %p122 = scmp.eq.s32.totalorder %s21, 9
    %p123 = por %p121, %p122
    %p124 = scmp.ne.s32.totalorder %s115, %s116
    %p125 = scmp.eq.s32.totalorder %s21, 0
    %p126 = por %p124, %p125
    %p127 = scmp.ne.s32.totalorder %s115, %s116
    %p128 = scmp.eq.s32.totalorder %s22, 9
    %p129 = por %p127, %p128
    %p131 = scmp.ne.s32.totalorder %s116, %s130
    %p132 = scmp.eq.s32.totalorder %s22, 0
    %p133 = por %p131, %p132
    %s135 = sadd.s32 %s134, 1
    %p138 = scmp.eq.s32.totalorder %s16, 9
    %p139 = scmp.ne.s32.totalorder %s134, %s136
    %p140 = scmp.eq.s32.totalorder %s16, 0
    %p141 = por %p139, %p140
    %p142 = scmp.ne.s32.totalorder %s134, %s136
    %p143 = scmp.eq.s32.totalorder %s21, 9
    %p144 = por %p142, %p143
    %p145 = scmp.ne.s32.totalorder %s136, %s137
    %p146 = scmp.eq.s32.totalorder %s21, 0
    %p147 = por %p145, %p146
    %p148 = scmp.ne.s32.totalorder %s136, %s137
    %p149 = scmp.eq.s32.totalorder %s22, 9
    %p150 = por %p148, %p149
    %p152 = scmp.ne.s32.totalorder %s137, %s151
    %p153 = scmp.eq.s32.totalorder %s22, 0
    %p154 = por %p152, %p153
    %s156 = sadd.s32 %s155, 1
    %p159 = scmp.eq.s32.totalorder %s16, 9
    %p160 = scmp.ne.s32.totalorder %s155, %s157
    %p161 = scmp.eq.s32.totalorder %s16, 0
    %p162 = por %p160, %p161
    %p163 = scmp.ne.s32.totalorder %s155, %s157
    %p164 = scmp.eq.s32.totalorder %s21, 9
    %p165 = por %p163, %p164
    %p166 = scmp.ne.s32.totalorder %s157, %s158
    %p167 = scmp.eq.s32.totalorder %s21, 0
    %p168 = por %p166, %p167
    %p169 = scmp.ne.s32.totalorder %s157, %s158
    %p170 = scmp.eq.s32.totalorder %s22, 9
    %p171 = por %p169, %p170
    %p173 = scmp.ne.s32.totalorder %s158, %s172
    %p174 = scmp.eq.s32.totalorder %s22, 0
    %p175 = por %p173, %p174
    %s177 = sadd.s32 %s176, 1
    %p180 = scmp.eq.s32.totalorder %s16, 9
    %p181 = scmp.ne.s32.totalorder %s176, %s178
    %p182 = scmp.eq.s32.totalorder %s16, 0
    %p183 = por %p181, %p182
    %p184 = scmp.ne.s32.totalorder %s176, %s178
    %p185 = scmp.eq.s32.totalorder %s21, 9
    %p186 = por %p184, %p185
    %p187 = scmp.ne.s32.totalorder %s178, %s179
    %p188 = scmp.eq.s32.totalorder %s21, 0
    %p189 = por %p187, %p188
    %p190 = scmp.ne.s32.totalorder %s178, %s179
    %p191 = scmp.eq.s32.totalorder %s22, 9
    %p192 = por %p190, %p191
    %p194 = scmp.ne.s32.totalorder %s179, %s193
    %p195 = scmp.eq.s32.totalorder %s22, 0
    %p196 = por %p194, %p195
    %s197 = ssub.s32 %s23, %s35
    %s198 = ssub.s32 %s24, %s31
    %s199 = sor.u32 %s197, %s198
    %p200 = scmp.eq.s32.totalorder %s199, 0
    %s202 = sadd.s32 %s201, 1
    %s203 = scalar_select %p200, %s201, %s202
    %p206 = pneg %p200
    %p207 = scmp.eq.s32.totalorder %s16, 9
    %p208 = por %p206, %p207
    %p209 = scmp.ne.s32.totalorder %s201, %s204
    %p210 = scmp.eq.s32.totalorder %s16, 0
    %p211 = por %p209, %p210
    %p212 = scmp.ne.s32.totalorder %s201, %s204
    %p213 = scmp.eq.s32.totalorder %s21, 9
    %p214 = por %p212, %p213
    %p215 = scmp.ne.s32.totalorder %s204, %s205
    %p216 = scmp.eq.s32.totalorder %s21, 0
    %p217 = por %p215, %p216
    %p218 = scmp.ne.s32.totalorder %s204, %s205
    %p219 = scmp.eq.s32.totalorder %s22, 9
    %p220 = por %p218, %p219
    %p222 = scmp.ne.s32.totalorder %s205, %s221
    %p223 = scmp.eq.s32.totalorder %s22, 0
    %p224 = por %p222, %p223
    %s225 = ssub.s32 %s23, %s35
    %s226 = ssub.s32 %s24, %s31
    %s227 = sor.u32 %s225, %s226
    %p228 = scmp.eq.s32.totalorder %s227, 0
    %s230 = sadd.s32 %s229, 1
    %s231 = scalar_select %p228, %s229, %s230
    %p234 = pneg %p228
    %p235 = scmp.eq.s32.totalorder %s16, 9
    %p236 = por %p234, %p235
    %p237 = scmp.ne.s32.totalorder %s229, %s232
    %p238 = scmp.eq.s32.totalorder %s16, 0
    %p239 = por %p237, %p238
    %p240 = scmp.ne.s32.totalorder %s229, %s232
    %p241 = scmp.eq.s32.totalorder %s21, 9
    %p242 = por %p240, %p241
    %p243 = scmp.ne.s32.totalorder %s232, %s233
    %p244 = scmp.eq.s32.totalorder %s21, 0
    %p245 = por %p243, %p244
    %p246 = scmp.ne.s32.totalorder %s232, %s233
    %p247 = scmp.eq.s32.totalorder %s22, 9
    %p248 = por %p246, %p247
    %p250 = scmp.ne.s32.totalorder %s233, %s249
    %p251 = scmp.eq.s32.totalorder %s22, 0
    %p252 = por %p250, %p251
    %s253 = ssub.s32 %s23, %s35
    %s254 = ssub.s32 %s24, %s31
    %s255 = sor.u32 %s253, %s254
    %p256 = scmp.eq.s32.totalorder %s255, 0
    %s258 = sadd.s32 %s257, 1
    %s259 = scalar_select %p256, %s257, %s258
    %p262 = pneg %p256
    %p263 = scmp.eq.s32.totalorder %s16, 9
    %p264 = por %p262, %p263
    %p265 = scmp.ne.s32.totalorder %s257, %s260
    %p266 = scmp.eq.s32.totalorder %s16, 0
    %p267 = por %p265, %p266
    %p268 = scmp.ne.s32.totalorder %s257, %s260
    %p269 = scmp.eq.s32.totalorder %s21, 9
    %p270 = por %p268, %p269
    %p271 = scmp.ne.s32.totalorder %s260, %s261
    %p272 = scmp.eq.s32.totalorder %s21, 0
    %p273 = por %p271, %p272
    %p274 = scmp.ne.s32.totalorder %s260, %s261
    %p275 = scmp.eq.s32.totalorder %s22, 9
    %p276 = por %p274, %p275
    %p278 = scmp.ne.s32.totalorder %s261, %s277
    %p279 = scmp.eq.s32.totalorder %s22, 0
    %p280 = por %p278, %p279
    %p281 = scmp.le.s32.totalorder 1, %s16
    %p282 = scmp.lt.s32.totalorder %s16, 11
    %p283 = pnand %p281, %p282
    %p284 = pneg %p283
    // Predicated region
    $region9: #{deformable_encoder_layer.2} parent=5 // pred_check
      _
    $region10: #{deformable_encoder_layer.2} parent=5 // pred_check_branch
      %286 = sbr.rel (%p283) target = $region12
    $region11: #{deformable_encoder_layer.2} parent=5 // pred_region
      %s287 = ssub.s32 %s16, 1
      // Predicated region
      $region13: #{deformable_encoder_layer.2} parent=11 // pred_check
        %p288 = pneg %p105
      $region14: #{deformable_encoder_layer.2} parent=11 // pred_check_branch
        %290 = sbr.rel (%p288) target = $region16
      $region15: #{deformable_encoder_layer.2} parent=11 // pred_region
        _
      $region16: #{deformable_encoder_layer.2} parent=11 // pred_fallthru
        _
      // Predicated region
      $region17: #{deformable_encoder_layer.2} parent=11 // pred_check
        %p291 = pneg %p126
      $region18: #{deformable_encoder_layer.2} parent=11 // pred_check_branch
        %293 = sbr.rel (%p291) target = $region20
      $region19: #{deformable_encoder_layer.2} parent=11 // pred_region
        _
      $region20: #{deformable_encoder_layer.2} parent=11 // pred_fallthru
        _
      // Predicated region
      $region21: #{deformable_encoder_layer.2} parent=11 // pred_check
        %p294 = pneg %p147
      $region22: #{deformable_encoder_layer.2} parent=11 // pred_check_branch
        %296 = sbr.rel (%p294) target = $region24
      $region23: #{deformable_encoder_layer.2} parent=11 // pred_region
        _
      $region24: #{deformable_encoder_layer.2} parent=11 // pred_fallthru
        _
      // Predicated region
      $region25: #{deformable_encoder_layer.2} parent=11 // pred_check
        %p297 = pneg %p168
      $region26: #{deformable_encoder_layer.2} parent=11 // pred_check_branch
        %299 = sbr.rel (%p297) target = $region28
      $region27: #{deformable_encoder_layer.2} parent=11 // pred_region
        _
      $region28: #{deformable_encoder_layer.2} parent=11 // pred_fallthru
        _
      // Predicated region
      $region29: #{deformable_encoder_layer.2} parent=11 // pred_check
        %p300 = pneg %p189
      $region30: #{deformable_encoder_layer.2} parent=11 // pred_check_branch
        %302 = sbr.rel (%p300) target = $region32
      $region31: #{deformable_encoder_layer.2} parent=11 // pred_region
        _
      $region32: #{deformable_encoder_layer.2} parent=11 // pred_fallthru
        _
    $region12: #{deformable_encoder_layer.2} parent=5 // pred_fallthru
      _
    %p303 = scmp.lt.s32.totalorder %s16, 10
    // Predicated region
    $region33: #{deformable_encoder_layer.2} parent=5 // pred_check
      %p304 = pneg %p303
    $region34: #{deformable_encoder_layer.2} parent=5 // pred_check_branch
      %306 = sbr.rel (%p304) target = $region36
    $region35: #{deformable_encoder_layer.2} parent=5 // pred_region
      // Predicated region
      $region37: #{deformable_encoder_layer.2} parent=35 // pred_check
        %p307 = pneg %p50
      $region38: #{deformable_encoder_layer.2} parent=35 // pred_check_branch
        %309 = sbr.rel (%p307) target = $region40
      $region39: #{deformable_encoder_layer.2} parent=35 // pred_region
        %s310 = smul.u32 2, %s24
        %p311 = scmp.lt.s32.totalorder %s23, 1
        %s312 = scalar_select %p311, %s23, 1
        %p313 = scmp.lt.s32.totalorder %s310, 9
        %s314 = scalar_select %p313, %s310, 9
        %s315 = smul.addr %s312, 10
        %s316 = sadd.s32 %s314, %s315
        %s317 = smul.addr %s316, 8
        %s318 = scalar_lea.vmem %s0, %s317
        %s319 = smul.u32 2, %s24
      $region40: #{deformable_encoder_layer.2} parent=35 // pred_fallthru
        _
      // Predicated region
      $region41: #{deformable_encoder_layer.2} parent=35 // pred_check
        %p320 = pneg %p78
      $region42: #{deformable_encoder_layer.2} parent=35 // pred_check_branch
        %322 = sbr.rel (%p320) target = $region44
      $region43: #{deformable_encoder_layer.2} parent=35 // pred_region
        %s323 = smul.u32 2, %s24
        %p324 = scmp.lt.s32.totalorder %s23, 1
        %s325 = scalar_select %p324, %s23, 1
        %p326 = scmp.lt.s32.totalorder %s323, 9
        %s327 = scalar_select %p326, %s323, 9
        %s328 = smul.addr %s325, 10
        %s329 = sadd.s32 %s327, %s328
        %s330 = smul.addr %s329, 8
        %s331 = scalar_lea.vmem %s1, %s330
        %s332 = smul.u32 2, %s24
      $region44: #{deformable_encoder_layer.2} parent=35 // pred_fallthru
        _
    $region36: #{deformable_encoder_layer.2} parent=5 // pred_fallthru
      _
    %p333 = scmp.le.s32.totalorder 1, %s16
    %p334 = scmp.lt.s32.totalorder %s16, 11
    %p335 = pnand %p333, %p334
    %p336 = pneg %p335
    // Predicated region
    $region45: #{deformable_encoder_layer.2} parent=5 // pred_check
      _
    $region46: #{deformable_encoder_layer.2} parent=5 // pred_check_branch
      %338 = sbr.rel (%p335) target = $region48
    $region47: #{deformable_encoder_layer.2} parent=5 // pred_region
      %s339 = ssub.s32 %s16, 1
      %s340 = smul.u32 2, %s26
      %p341 = scmp.lt.s32.totalorder %s25, 1
      %s342 = scalar_select %p341, %s25, 1
      %p343 = scmp.lt.s32.totalorder %s340, 9
      %s344 = scalar_select %p343, %s340, 9
      %s345 = smul.addr %s342, 10
      %s346 = sadd.s32 %s344, %s345
      %s347 = smul.addr %s346, 8
      %s348 = scalar_lea.vmem %s0, %s347
      %p349 = pneg %p56
      %p350 = pneg %p53
      %s351 = smul.u32 2, %s26
      %p352 = scmp.lt.s32.totalorder %s25, 1
      %s353 = scalar_select %p352, %s25, 1
      %p354 = scmp.lt.s32.totalorder %s351, 9
      %s355 = scalar_select %p354, %s351, 9
      %s356 = smul.addr %s353, 10
      %s357 = sadd.s32 %s355, %s356
      %s358 = smul.addr %s357, 8
      %s359 = scalar_lea.vmem %s1, %s358
      %p360 = pneg %p84
      %p361 = pneg %p81
      %p362 = pneg %p105
      %p363 = pneg %p102
      %p364 = pneg %p126
      %p365 = pneg %p123
      %p366 = pneg %p147
      %p367 = pneg %p144
      %p368 = pneg %p168
      %p369 = pneg %p165
      %p370 = pneg %p189
      %p371 = pneg %p186
      %p372 = pneg %p217
      %p373 = pneg %p214
      %s374 = smul.u32 2, %s26
      %p375 = scmp.lt.s32.totalorder %s25, 1
      %s376 = scalar_select %p375, %s25, 1
      %p377 = scmp.lt.s32.totalorder %s374, 9
      %s378 = scalar_select %p377, %s374, 9
      %s379 = smul.addr %s376, 10
      %s380 = sadd.s32 %s378, %s379
      %s381 = smul.addr %s380, 8
      %s382 = scalar_lea.vmem %s7, %s381
      %p383 = pneg %p245
      %p384 = pneg %p242
      %s385 = smul.u32 2, %s26
      %p386 = scmp.lt.s32.totalorder %s25, 1
      %s387 = scalar_select %p386, %s25, 1
      %p388 = scmp.lt.s32.totalorder %s385, 9
      %s389 = scalar_select %p388, %s385, 9
      %s390 = smul.addr %s387, 10
      %s391 = sadd.s32 %s389, %s390
      %s392 = smul.addr %s391, 8
      %s393 = scalar_lea.vmem %s8, %s392
      %p394 = pneg %p273
      %p395 = pneg %p270
      %s396 = smul.u32 2, %s26
      %p397 = scmp.lt.s32.totalorder %s25, 1
      %s398 = scalar_select %p397, %s25, 1
      %p399 = scmp.lt.s32.totalorder %s396, 9
      %s400 = scalar_select %p399, %s396, 9
      %s401 = smul.addr %s398, 10
      %s402 = sadd.s32 %s400, %s401
      %s403 = smul.addr %s402, 8
      %s404 = scalar_lea.vmem %s9, %s403
      %s405 = smul.u32 2, %s26
      %p406 = scmp.lt.s32.totalorder %s25, 1
      %s407 = scalar_select %p406, %s25, 1
      %p408 = scmp.lt.s32.totalorder %s405, 9
      %s409 = scalar_select %p408, %s405, 9
      %s410 = smul.addr %s407, 10
      %s411 = sadd.s32 %s409, %s410
      %s412 = smul.addr %s411, 8
      %s413 = scalar_lea.vmem %s0, %s412
      %s414 = smul.u32 2, %s26
      %s415 = smul.u32 2, %s26
      %p416 = scmp.lt.s32.totalorder %s25, 1
      %s417 = scalar_select %p416, %s25, 1
      %p418 = scmp.lt.s32.totalorder %s415, 9
      %s419 = scalar_select %p418, %s415, 9
      %s420 = smul.addr %s417, 10
      %s421 = sadd.s32 %s419, %s420
      %s422 = smul.addr %s421, 8
      %s423 = scalar_lea.vmem %s1, %s422
      %s424 = smul.u32 2, %s26
      %s425 = smul.u32 2, %s26
      %p426 = scmp.lt.s32.totalorder %s25, 1
      %s427 = scalar_select %p426, %s25, 1
      %p428 = scmp.lt.s32.totalorder %s425, 9
      %s429 = scalar_select %p428, %s425, 9
      %s430 = smul.addr %s427, 10
      %s431 = sadd.s32 %s429, %s430
      %s432 = smul.addr %s431, 8
      %s433 = scalar_lea.vmem %s7, %s432
      %s434 = smul.u32 2, %s26
      %s435 = smul.u32 2, %s26
      %p436 = scmp.lt.s32.totalorder %s25, 1
      %s437 = scalar_select %p436, %s25, 1
      %p438 = scmp.lt.s32.totalorder %s435, 9
      %s439 = scalar_select %p438, %s435, 9
      %s440 = smul.addr %s437, 10
      %s441 = sadd.s32 %s439, %s440
      %s442 = smul.addr %s441, 8
      %s443 = scalar_lea.vmem %s8, %s442
      %s444 = smul.u32 2, %s26
      %s445 = smul.u32 2, %s26
      %p446 = scmp.lt.s32.totalorder %s25, 1
      %s447 = scalar_select %p446, %s25, 1
      %p448 = scmp.lt.s32.totalorder %s445, 9
      %s449 = scalar_select %p448, %s445, 9
      %s450 = smul.addr %s447, 10
      %s451 = sadd.s32 %s449, %s450
      %s452 = smul.addr %s451, 8
      %s453 = scalar_lea.vmem %s9, %s452
      %s454 = smul.u32 2, %s26
      %v455 = vld [vmem:[%s413] sm:$0xff]
      %v456 = vld [vmem:[%s413 + $0x8] sm:$0xff]
      %v457 = vld [vmem:[%s423] sm:$0xff]
      %v458 = vld [vmem:[%s423 + $0x8] sm:$0xff]
      %v459 = vadd.f32 %v455, %v457
      %v460 = vadd.f32 %v456, %v458
      %v461 = vld [vmem:[%s2] sm:$0xff]
      %v462 = vld [vmem:[%s2 + $0x8] sm:$0xff]
      %v463 = vld [vmem:[%s2 + $0x10] sm:$0xff]
      %v464 = vld [vmem:[%s2 + $0x18] sm:$0xff]
      %v465 = vld [vmem:[%s3] sm:$0x1]
      %v467 = vperm.slane %v465, 0
      %vm469 = vcmask 261120
      %v471 = vsel %vm469, %v455, 0
      %v474 = vsel %vm469, %v456, 0
      %476 = vmatpush.msra.mxu0 0.0
      %477 = vmatpush.msra.mxu0 0.0
      %478 = vmatpush.msra.mxu0 0.0
      %479 = vmatpush.msra.mxu0 0.0
      %480 = vmatpush.msra.mxu0 0.0
      %481 = vmatpush.msra.mxu0 0.0
      %482 = vmatpush.msra.mxu0 0.0
      %483 = vmatpush.msra.mxu0 0.0
      %484 = vmatpush.msra.mxu0 0.0
      %485 = vmatpush.msra.mxu0 0.0
      %486 = vmatpush.msra.mxu0 0.0
      %487 = vmatpush.msra.mxu0 0.0
      %488 = vmatpush.msra.mxu0 %v464
      %489 = vmatpush.msra.mxu0 %v463
      %490 = vmatpush.msra.mxu0 %v462
      %491 = vmatpush.msra.mxu0 %v461
      %492 = vmatmul.f32.gmra.mxu0 %v471
      %v493 = vpop.f32.mrf.mxu0
      %v494 = vadd.f32 %v467, %v493
      %495 = vmatmul.f32.gmra.mxu0 %v474
      %v496 = vpop.f32.mrf.mxu0
      %v497 = vadd.f32 %v467, %v496
      %498 = vdwg.mxu0
      %499 = vst.msk [vmem:[%s433] sm:$0xff] %vm469, %v494
      %500 = vst.msk [vmem:[%s433 + $0x8] sm:$0xff] %vm469, %v497
      %v501 = vld [vmem:[%s4] sm:$0xff]
      %v502 = vld [vmem:[%s4 + $0x8] sm:$0xff]
      %v503 = vld [vmem:[%s4 + $0x10] sm:$0xff]
      %v504 = vld [vmem:[%s4 + $0x18] sm:$0xff]
      %v505 = vld [vmem:[%s5] sm:$0x1]
      %v507 = vperm.slane %v505, 0
      %v510 = vsel %vm469, %v459, 0
      %v513 = vsel %vm469, %v460, 0
      %515 = vmatpush.msra.mxu0 0.0
      %516 = vmatpush.msra.mxu0 0.0
      %517 = vmatpush.msra.mxu0 0.0
      %518 = vmatpush.msra.mxu0 0.0
      %519 = vmatpush.msra.mxu0 0.0
      %520 = vmatpush.msra.mxu0 0.0
      %521 = vmatpush.msra.mxu0 0.0
      %522 = vmatpush.msra.mxu0 0.0
      %523 = vmatpush.msra.mxu0 0.0
      %524 = vmatpush.msra.mxu0 0.0
      %525 = vmatpush.msra.mxu0 0.0
      %526 = vmatpush.msra.mxu0 0.0
      %527 = vmatpush.msra.mxu0 %v504
      %528 = vmatpush.msra.mxu0 %v503
      %529 = vmatpush.msra.mxu0 %v502
      %530 = vmatpush.msra.mxu0 %v501
      %531 = vmatmul.f32.gmra.mxu0 %v510
      %v532 = vpop.f32.mrf.mxu0
      %v533 = vadd.f32 %v507, %v532
      %534 = vmatmul.f32.gmra.mxu0 %v513
      %v535 = vpop.f32.mrf.mxu0
      %v536 = vadd.f32 %v507, %v535
      %537 = vdwg.mxu0
      %538 = vst.msk [vmem:[%s443] sm:$0xff] %vm469, %v533
      %539 = vst.msk [vmem:[%s443 + $0x8] sm:$0xff] %vm469, %v536
      %v540 = vld [vmem:[%s6] sm:$0xff]
      %v541 = vld [vmem:[%s6 + $0x8] sm:$0xff]
      %vm542 = vcmp.gt.f32.partialorder %v540, 0.0
      %v543 = vsel %vm542, 1, 0
      %v544 = vperm.slane %v543, 0
      %vm545 = vcmp.eq.s32.totalorder %v544, 1
      %548 = vrot.lane.b32.xlu0 %v533, 96
      %v549 = vpop.permute.xlu0 %548
      %550 = vrot.lane.b32.xlu0 %v536, 96
      %v551 = vpop.permute.xlu0 %550
      %v554 = vsel %vm545, %v549, -1e+30
      %v555 = vsel %vm545, %v551, -1e+30
      %vm556 = vcmask 130048
      %v557 = vsel %vm556, %v554, -inf
      %558 = vmax.xlane.f32.xlu0 %v557
      %v559 = vpop.xlane.xlu0 %558
      %v560 = vsel %vm556, %v555, -inf
      %561 = vmax.xlane.f32.xlu0 %v560
      %v562 = vpop.xlane.xlu0 %561
      %v563 = vsel %vm545, %v559, 0.0
      %v564 = vsel %vm545, %v562, 0.0
      %v565 = vadd.f32 %v563, 0.0
      %v566 = vadd.f32 %v564, 0.0
      %v567 = vperm.slane %v543, 4
      %vm568 = vcmp.eq.s32.totalorder %v567, 1
      %v569 = vsel %vm568, %v549, -1e+30
      %v570 = vsel %vm568, %v551, -1e+30
      %v571 = vsel %vm556, %v569, -inf
      %572 = vmax.xlane.f32.xlu0 %v571
      %v573 = vpop.xlane.xlu0 %572
      %v574 = vsel %vm556, %v570, -inf
      %575 = vmax.xlane.f32.xlu0 %v574
      %v576 = vpop.xlane.xlu0 %575
      %v577 = vsel %vm568, %v573, 0.0
      %v578 = vsel %vm568, %v576, 0.0
      %v579 = vadd.f32 %v565, %v577
      %v580 = vadd.f32 %v566, %v578
      %vm581 = vcmp.gt.f32.partialorder %v541, 0.0
      %v582 = vsel %vm581, 1, 0
      %v583 = vperm.slane %v582, 0
      %vm584 = vcmp.eq.s32.totalorder %v583, 1
      %v585 = vsel %vm584, %v549, -1e+30
      %v586 = vsel %vm584, %v551, -1e+30
      %v587 = vsel %vm556, %v585, -inf
      %588 = vmax.xlane.f32.xlu0 %v587
      %v589 = vpop.xlane.xlu0 %588
      %v590 = vsel %vm556, %v586, -inf
      %591 = vmax.xlane.f32.xlu0 %v590
      %v592 = vpop.xlane.xlu0 %591
      %v593 = vsel %vm584, %v589, 0.0
      %v594 = vsel %vm584, %v592, 0.0
      %v595 = vadd.f32 %v579, %v593
      %v596 = vadd.f32 %v580, %v594
      %v597 = vperm.slane %v582, 4
      %vm598 = vcmp.eq.s32.totalorder %v597, 1
      %v599 = vsel %vm598, %v549, -1e+30
      %v600 = vsel %vm598, %v551, -1e+30
      %v601 = vsel %vm556, %v599, -inf
      %602 = vmax.xlane.f32.xlu0 %v601
      %v603 = vpop.xlane.xlu0 %602
      %v604 = vsel %vm556, %v600, -inf
      %605 = vmax.xlane.f32.xlu0 %v604
      %v606 = vpop.xlane.xlu0 %605
      %v607 = vsel %vm598, %v603, 0.0
      %v608 = vsel %vm598, %v606, 0.0
      %v609 = vadd.f32 %v595, %v607
      %v610 = vadd.f32 %v596, %v608
      %613 = vrot.lane.b32.xlu0 %v609, 32
      %v614 = vpop.permute.xlu0 %613
      %615 = vrot.lane.b32.xlu0 %v610, 32
      %v616 = vpop.permute.xlu0 %615
      %v619 = vsub.f32 %v533, %v614
      %v620 = vsub.f32 %v536, %v616
      %v621 = vmul.f32 %v619, 1.442695
      %v622 = vpow.pop %v621
      %v623 = vmul.f32 %v620, 1.442695
      %v624 = vpow.pop %v623
      %627 = vrot.lane.b32.xlu0 %v622, 96
      %v628 = vpop.permute.xlu0 %627
      %629 = vrot.lane.b32.xlu0 %v624, 96
      %v630 = vpop.permute.xlu0 %629
      %v631 = vsel %vm556, %v628, 0
      %v633 = vsel %vm556, %v630, 0
      %635 = vmatpush.msra.mxu0 0.0
      %636 = vmatpush.msra.mxu0 0.0
      %637 = vmatpush.msra.mxu0 0.0
      %638 = vmatpush.msra.mxu0 0.0
      %639 = vmatpush.msra.mxu0 0.0
      %640 = vmatpush.msra.mxu0 0.0
      %641 = vmatpush.msra.mxu0 0.0
      %642 = vmatpush.msra.mxu0 0.0
      %643 = vmatpush.msra.mxu0 0.0
      %644 = vmatpush.msra.mxu0 0.0
      %645 = vmatpush.msra.mxu0 0.0
      %646 = vmatpush.msra.mxu0 0.0
      %647 = vmatpush.msra.mxu0 0.0
      %648 = vmatpush.msra.mxu0 0.0
      %649 = vmatpush.msra.mxu0 %v541
      %650 = vmatpush.msra.mxu0 %v540
      %651 = vmatmul.f32.gmra.mxu0 %v631
      %v652 = vpop.f32.mrf.mxu0
      %v653 = vadd.f32 0.0, %v652
      %654 = vmatmul.f32.gmra.mxu0 %v633
      %v655 = vpop.f32.mrf.mxu0
      %v656 = vadd.f32 0.0, %v655
      %657 = vdwg.mxu0
      %660 = vrot.lane.b32.xlu0 %v653, 32
      %v661 = vpop.permute.xlu0 %660
      %662 = vrot.lane.b32.xlu0 %v656, 32
      %v663 = vpop.permute.xlu0 %662
      %v666 = vrcp.pop %v661
      %v667 = vmul.f32 %v661, %v666
      %v668 = vsub.f32 1.0, %v667
      %v669 = vmul.f32 %v666, %v668
      %v670 = vadd.f32 %v666, %v669
      %vm671 = vweird.f32 %v661
      %vm672 = vweird.f32 %v666
      %vm673 = vmor %vm671, %vm672
      %v674 = vsel %vm673, %v666, %v670
      %v675 = vand.u32 2147483647, %v661
      %vm676 = vcmp.eq.f32.partialorder %v675, 8.507059e+37
      %v677 = vand.u32 %v661, 2147483648
      %v678 = vor.u32 1.1754944e-38, %v677
      %v679 = vsel %vm676, %v678, %v674
      %v680 = vmul.f32 %v622, %v679
      %v681 = vrcp.pop %v663
      %v682 = vmul.f32 %v663, %v681
      %v683 = vsub.f32 1.0, %v682
      %v684 = vmul.f32 %v681, %v683
      %v685 = vadd.f32 %v681, %v684
      %vm686 = vweird.f32 %v663
      %vm687 = vweird.f32 %v681
      %vm688 = vmor %vm686, %vm687
      %v689 = vsel %vm688, %v681, %v685
      %v690 = vand.u32 2147483647, %v663
      %vm691 = vcmp.eq.f32.partialorder %v690, 8.507059e+37
      %v692 = vand.u32 %v663, 2147483648
      %v693 = vor.u32 1.1754944e-38, %v692
      %v694 = vsel %vm691, %v693, %v689
      %v695 = vmul.f32 %v624, %v694
      %698 = vrot.lane.b32.xlu0 %v680, 96
      %v699 = vpop.permute.xlu0 %698
      %700 = vrot.lane.b32.xlu0 %v695, 96
      %v701 = vpop.permute.xlu0 %700
      %704 = vst.msk [vmem:[%s453] sm:$0xff] %vm556, %v699
      %705 = vst.msk [vmem:[%s453 + $0x8] sm:$0xff] %vm556, %v701
      %s706 = smul.u32 2, %s26
      %p707 = scmp.lt.s32.totalorder %s25, 1
      %s708 = scalar_select %p707, %s25, 1
      %p709 = scmp.lt.s32.totalorder %s706, 9
      %s710 = scalar_select %p709, %s706, 9
      %s711 = smul.addr %s708, 10
      %s712 = sadd.s32 %s710, %s711
      %s713 = smul.addr %s712, 8
      %s714 = scalar_lea.vmem %s7, %s713
      %s715 = smul.u32 2, %s26
      %p716 = scmp.lt.s32.totalorder %s25, 1
      %s717 = scalar_select %p716, %s25, 1
      %p718 = scmp.lt.s32.totalorder %s715, 9
      %s719 = scalar_select %p718, %s715, 9
      %s720 = smul.addr %s717, 10
      %s721 = sadd.s32 %s719, %s720
      %s722 = smul.addr %s721, 8
      %s723 = scalar_lea.vmem %s8, %s722
      %s724 = smul.u32 2, %s26
      %p725 = scmp.lt.s32.totalorder %s25, 1
      %s726 = scalar_select %p725, %s25, 1
      %p727 = scmp.lt.s32.totalorder %s724, 9
      %s728 = scalar_select %p727, %s724, 9
      %s729 = smul.addr %s726, 10
      %s730 = sadd.s32 %s728, %s729
      %s731 = smul.addr %s730, 8
      %s732 = scalar_lea.vmem %s9, %s731
      // Predicated region
      $region49: #{deformable_encoder_layer.2} parent=47 // pred_check
        %p733 = pneg %p214
      $region50: #{deformable_encoder_layer.2} parent=47 // pred_check_branch
        %735 = sbr.rel (%p733) target = $region52
      $region51: #{deformable_encoder_layer.2} parent=47 // pred_region
        %s736 = smul.u32 2, %s26
      $region52: #{deformable_encoder_layer.2} parent=47 // pred_fallthru
        _
      // Predicated region
      $region53: #{deformable_encoder_layer.2} parent=47 // pred_check
        %p737 = pneg %p242
      $region54: #{deformable_encoder_layer.2} parent=47 // pred_check_branch
        %739 = sbr.rel (%p737) target = $region56
      $region55: #{deformable_encoder_layer.2} parent=47 // pred_region
        %s740 = smul.u32 2, %s26
      $region56: #{deformable_encoder_layer.2} parent=47 // pred_fallthru
        _
      // Predicated region
      $region57: #{deformable_encoder_layer.2} parent=47 // pred_check
        %p741 = pneg %p270
      $region58: #{deformable_encoder_layer.2} parent=47 // pred_check_branch
        %743 = sbr.rel (%p741) target = $region60
      $region59: #{deformable_encoder_layer.2} parent=47 // pred_region
        %s744 = smul.u32 2, %s26
      $region60: #{deformable_encoder_layer.2} parent=47 // pred_fallthru
        _
    $region48: #{deformable_encoder_layer.2} parent=5 // pred_fallthru
      _
    %p745 = scmp.le.s32.totalorder 2, %s16
    // Predicated region
    $region61: #{deformable_encoder_layer.2} parent=5 // pred_check
      %p746 = pneg %p745
    $region62: #{deformable_encoder_layer.2} parent=5 // pred_check_branch
      %748 = sbr.rel (%p746) target = $region64
    $region63: #{deformable_encoder_layer.2} parent=5 // pred_region
      %s749 = ssub.s32 %s16, 2
      // Predicated region
      $region65: #{deformable_encoder_layer.2} parent=63 // pred_check
        %p750 = pneg %p220
      $region66: #{deformable_encoder_layer.2} parent=63 // pred_check_branch
        %752 = sbr.rel (%p750) target = $region68
      $region67: #{deformable_encoder_layer.2} parent=63 // pred_region
        %s753 = smul.u32 2, %s28
        %p754 = scmp.lt.s32.totalorder %s27, 1
        %s755 = scalar_select %p754, %s27, 1
        %p756 = scmp.lt.s32.totalorder %s753, 9
        %s757 = scalar_select %p756, %s753, 9
        %s758 = smul.addr %s755, 10
        %s759 = sadd.s32 %s757, %s758
        %s760 = smul.addr %s759, 8
        %s761 = scalar_lea.vmem %s7, %s760
      $region68: #{deformable_encoder_layer.2} parent=63 // pred_fallthru
        _
      // Predicated region
      $region69: #{deformable_encoder_layer.2} parent=63 // pred_check
        %p762 = pneg %p248
      $region70: #{deformable_encoder_layer.2} parent=63 // pred_check_branch
        %764 = sbr.rel (%p762) target = $region72
      $region71: #{deformable_encoder_layer.2} parent=63 // pred_region
        %s765 = smul.u32 2, %s28
        %p766 = scmp.lt.s32.totalorder %s27, 1
        %s767 = scalar_select %p766, %s27, 1
        %p768 = scmp.lt.s32.totalorder %s765, 9
        %s769 = scalar_select %p768, %s765, 9
        %s770 = smul.addr %s767, 10
        %s771 = sadd.s32 %s769, %s770
        %s772 = smul.addr %s771, 8
        %s773 = scalar_lea.vmem %s8, %s772
      $region72: #{deformable_encoder_layer.2} parent=63 // pred_fallthru
        _
      // Predicated region
      $region73: #{deformable_encoder_layer.2} parent=63 // pred_check
        %p774 = pneg %p276
      $region74: #{deformable_encoder_layer.2} parent=63 // pred_check_branch
        %776 = sbr.rel (%p774) target = $region76
      $region75: #{deformable_encoder_layer.2} parent=63 // pred_region
        %s777 = smul.u32 2, %s28
        %p778 = scmp.lt.s32.totalorder %s27, 1
        %s779 = scalar_select %p778, %s27, 1
        %p780 = scmp.lt.s32.totalorder %s777, 9
        %s781 = scalar_select %p780, %s777, 9
        %s782 = smul.addr %s779, 10
        %s783 = sadd.s32 %s781, %s782
        %s784 = smul.addr %s783, 8
        %s785 = scalar_lea.vmem %s9, %s784
      $region76: #{deformable_encoder_layer.2} parent=63 // pred_fallthru
        _
    $region64: #{deformable_encoder_layer.2} parent=5 // pred_fallthru
      _
  $region6: #{deformable_encoder_layer.2} parent=0 // loop_footer
    %s20 = sadd.s32 1, %s16
  $region7: #{deformable_encoder_layer.2} parent=0 // loop_footer_branch
    %15 = sbr.rel target = $region3
  $region8: #{deformable_encoder_layer.2} parent=0 // loop_exit
    _

// kernel: deformable_encoder_layer.3
$region0: #{deformable_encoder_layer.3}
  #allocation0 [shape = 'u32[]', space=smem, size = 0x4, offset = 0x4, fixed_abs, tag = 'smem constant byte address 0x4 - core index']
  #allocation1 [shape = 'u32[72,128]{1,0:T(1,128)}', space=vmem, size = 0x9000, scoped, tag = 'internal scratch']
  %s0 = inlined_call_operand.vmem [shape: f32[2,80,32], index: 0, kind: input, shape index: {}]
  %s1 = inlined_call_operand.vmem [shape: f32[2,80,32], index: 1, kind: input, shape index: {}]
  %s2 = inlined_call_operand.vmem [shape: f32[32,32], index: 2, kind: input, shape index: {}]
  %s3 = inlined_call_operand.vmem [shape: f32[1,32], index: 3, kind: input, shape index: {}]
  %s4 = inlined_call_operand.vmem [shape: f32[1,32], index: 4, kind: input, shape index: {}]
  %s5 = inlined_call_operand.vmem [shape: f32[1,32], index: 5, kind: input, shape index: {}]
  %s6 = inlined_call_operand.vmem [shape: f32[32,64], index: 6, kind: input, shape index: {}]
  %s7 = inlined_call_operand.vmem [shape: f32[1,64], index: 7, kind: input, shape index: {}]
  %s8 = inlined_call_operand.vmem [shape: f32[64,32], index: 8, kind: input, shape index: {}]
  %s9 = inlined_call_operand.vmem [shape: f32[1,32], index: 9, kind: input, shape index: {}]
  %s10 = inlined_call_operand.vmem [shape: f32[1,32], index: 10, kind: input, shape index: {}]
  %s11 = inlined_call_operand.vmem [shape: f32[1,32], index: 11, kind: input, shape index: {}]
  %s12 = inlined_call_operand.vmem [shape: f32[2,80,32], index: 12, kind: output, shape index: {}]
  %s13 = sld [smem:[#allocation0]]
  $region81: #{deformable_encoder_layer.3} parent=0
    _
  %s15 = ssub.s32 1, %s13
  %s16 = scalar_select 0, %s15, %s13
  loop: start=0, step=1, limit=12
  $region2: #{deformable_encoder_layer.3} parent=0 // loop_pre_header
    _
  $region3: #{deformable_encoder_layer.3} parent=0 // loop_header
    %s18 = sphi 0, %s22
    %p19 = scmp.ge.s32.totalorder %s18, 12
    %s25 = sphi 0, %s37
    %s26 = sphi 0, %s33
    %s27 = sphi 0, %s25
    %s28 = sphi 0, %s26
    %s29 = sphi 0, %s27
    %s30 = sphi 0, %s28
    %s42 = sphi 0, %s44
    %s45 = sphi 0, %s42
    %s46 = sphi 0, %s45
    %s62 = sphi 0, %s46
    %s70 = sphi 0, %s72
    %s73 = sphi 0, %s70
    %s74 = sphi 0, %s73
    %s90 = sphi 0, %s74
    %s94 = sphi 0, %s94
    %s96 = sphi 0, %s94
    %s97 = sphi 0, %s96
    %s111 = sphi 0, %s97
    %s115 = sphi 0, %s115
    %s117 = sphi 0, %s115
    %s118 = sphi 0, %s117
    %s132 = sphi 0, %s118
    %s136 = sphi 0, %s136
    %s138 = sphi 0, %s136
    %s139 = sphi 0, %s138
    %s153 = sphi 0, %s139
    %s157 = sphi 0, %s157
    %s159 = sphi 0, %s157
    %s160 = sphi 0, %s159
    %s174 = sphi 0, %s160
    %s178 = sphi 0, %s178
    %s180 = sphi 0, %s178
    %s181 = sphi 0, %s180
    %s195 = sphi 0, %s181
    %s199 = sphi 0, %s199
    %s201 = sphi 0, %s199
    %s202 = sphi 0, %s201
    %s216 = sphi 0, %s202
    %s220 = sphi 0, %s220
    %s222 = sphi 0, %s220
    %s223 = sphi 0, %s222
    %s237 = sphi 0, %s223
    %s241 = sphi 0, %s241
    %s243 = sphi 0, %s241
    %s244 = sphi 0, %s243
    %s258 = sphi 0, %s244
    %s262 = sphi 0, %s262
    %s264 = sphi 0, %s262
    %s265 = sphi 0, %s264
    %s279 = sphi 0, %s265
    %s283 = sphi 0, %s283
    %s285 = sphi 0, %s283
    %s286 = sphi 0, %s285
    %s300 = sphi 0, %s286
    %s308 = sphi 0, %s310
    %s311 = sphi 0, %s308
    %s312 = sphi 0, %s311
    %s328 = sphi 0, %s312
  $region4: #{deformable_encoder_layer.3} parent=0 // loop_header_branch
    %21 = sbr.rel (%p19) target = $region8
  $region5: #{deformable_encoder_layer.3} parent=0 // loop_body
    %s23 = ssub.s32 %s18, 1
    %s24 = ssub.s32 %s18, 2
    %s31 = sadd.s32 1, %s26
    %p32 = scmp.ge.s32.totalorder %s31, 5
    %s33 = scalar_select %p32, 0, %s31
    %s34 = sadd.s32 1, %s25
    %s35 = scalar_select %p32, %s34, %s25
    %p36 = scmp.ge.s32.totalorder %s35, 2
    %s37 = scalar_select %p36, 0, %s35
    %s38 = ssub.s32 %s25, %s37
    %s39 = ssub.s32 %s26, %s33
    %s40 = sor.u32 %s38, %s39
    %p41 = scmp.eq.s32.totalorder %s40, 0
    %s43 = sadd.s32 %s42, 1
    %s44 = scalar_select %p41, %s42, %s43
    %p47 = pneg %p41
    %p48 = scmp.eq.s32.totalorder %s18, 9
    %p49 = por %p47, %p48
    %p50 = scmp.ne.s32.totalorder %s42, %s45
    %p51 = scmp.eq.s32.totalorder %s18, 0
    %p52 = por %p50, %p51
    %p53 = scmp.ne.s32.totalorder %s42, %s45
    %p54 = scmp.eq.s32.totalorder %s23, 9
    %p55 = por %p53, %p54
    %p56 = scmp.ne.s32.totalorder %s45, %s46
    %p57 = scmp.eq.s32.totalorder %s23, 0
    %p58 = por %p56, %p57
    %p59 = scmp.ne.s32.totalorder %s45, %s46
    %p60 = scmp.eq.s32.totalorder %s24, 9
    %p61 = por %p59, %p60
    %p63 = scmp.ne.s32.totalorder %s46, %s62
    %p64 = scmp.eq.s32.totalorder %s24, 0
    %p65 = por %p63, %p64
    %s66 = ssub.s32 %s25, %s37
    %s67 = ssub.s32 %s26, %s33
    %s68 = sor.u32 %s66, %s67
    %p69 = scmp.eq.s32.totalorder %s68, 0
    %s71 = sadd.s32 %s70, 1
    %s72 = scalar_select %p69, %s70, %s71
    %p75 = pneg %p69
    %p76 = scmp.eq.s32.totalorder %s18, 9
    %p77 = por %p75, %p76
    %p78 = scmp.ne.s32.totalorder %s70, %s73
    %p79 = scmp.eq.s32.totalorder %s18, 0
    %p80 = por %p78, %p79
    %p81 = scmp.ne.s32.totalorder %s70, %s73
    %p82 = scmp.eq.s32.totalorder %s23, 9
    %p83 = por %p81, %p82
    %p84 = scmp.ne.s32.totalorder %s73, %s74
    %p85 = scmp.eq.s32.totalorder %s23, 0
    %p86 = por %p84, %p85
    %p87 = scmp.ne.s32.totalorder %s73, %s74
    %p88 = scmp.eq.s32.totalorder %s24, 9
    %p89 = por %p87, %p88
    %p91 = scmp.ne.s32.totalorder %s74, %s90
    %p92 = scmp.eq.s32.totalorder %s24, 0
    %p93 = por %p91, %p92
    %s95 = sadd.s32 %s94, 1
    %p98 = scmp.eq.s32.totalorder %s18, 9
    %p99 = scmp.ne.s32.totalorder %s94, %s96
    %p100 = scmp.eq.s32.totalorder %s18, 0
    %p101 = por %p99, %p100
    %p102 = scmp.ne.s32.totalorder %s94, %s96
    %p103 = scmp.eq.s32.totalorder %s23, 9
    %p104 = por %p102, %p103
    %p105 = scmp.ne.s32.totalorder %s96, %s97
    %p106 = scmp.eq.s32.totalorder %s23, 0
    %p107 = por %p105, %p106
    %p108 = scmp.ne.s32.totalorder %s96, %s97
    %p109 = scmp.eq.s32.totalorder %s24, 9
    %p110 = por %p108, %p109
    %p112 = scmp.ne.s32.totalorder %s97, %s111
    %p113 = scmp.eq.s32.totalorder %s24, 0
    %p114 = por %p112, %p113
    %s116 = sadd.s32 %s115, 1
    %p119 = scmp.eq.s32.totalorder %s18, 9
    %p120 = scmp.ne.s32.totalorder %s115, %s117
    %p121 = scmp.eq.s32.totalorder %s18, 0
    %p122 = por %p120, %p121
    %p123 = scmp.ne.s32.totalorder %s115, %s117
    %p124 = scmp.eq.s32.totalorder %s23, 9
    %p125 = por %p123, %p124
    %p126 = scmp.ne.s32.totalorder %s117, %s118
    %p127 = scmp.eq.s32.totalorder %s23, 0
    %p128 = por %p126, %p127
    %p129 = scmp.ne.s32.totalorder %s117, %s118
    %p130 = scmp.eq.s32.totalorder %s24, 9
    %p131 = por %p129, %p130
    %p133 = scmp.ne.s32.totalorder %s118, %s132
    %p134 = scmp.eq.s32.totalorder %s24, 0
    %p135 = por %p133, %p134
    %s137 = sadd.s32 %s136, 1
    %p140 = scmp.eq.s32.totalorder %s18, 9
    %p141 = scmp.ne.s32.totalorder %s136, %s138
    %p142 = scmp.eq.s32.totalorder %s18, 0
    %p143 = por %p141, %p142
    %p144 = scmp.ne.s32.totalorder %s136, %s138
    %p145 = scmp.eq.s32.totalorder %s23, 9
    %p146 = por %p144, %p145
    %p147 = scmp.ne.s32.totalorder %s138, %s139
    %p148 = scmp.eq.s32.totalorder %s23, 0
    %p149 = por %p147, %p148
    %p150 = scmp.ne.s32.totalorder %s138, %s139
    %p151 = scmp.eq.s32.totalorder %s24, 9
    %p152 = por %p150, %p151
    %p154 = scmp.ne.s32.totalorder %s139, %s153
    %p155 = scmp.eq.s32.totalorder %s24, 0
    %p156 = por %p154, %p155
    %s158 = sadd.s32 %s157, 1
    %p161 = scmp.eq.s32.totalorder %s18, 9
    %p162 = scmp.ne.s32.totalorder %s157, %s159
    %p163 = scmp.eq.s32.totalorder %s18, 0
    %p164 = por %p162, %p163
    %p165 = scmp.ne.s32.totalorder %s157, %s159
    %p166 = scmp.eq.s32.totalorder %s23, 9
    %p167 = por %p165, %p166
    %p168 = scmp.ne.s32.totalorder %s159, %s160
    %p169 = scmp.eq.s32.totalorder %s23, 0
    %p170 = por %p168, %p169
    %p171 = scmp.ne.s32.totalorder %s159, %s160
    %p172 = scmp.eq.s32.totalorder %s24, 9
    %p173 = por %p171, %p172
    %p175 = scmp.ne.s32.totalorder %s160, %s174
    %p176 = scmp.eq.s32.totalorder %s24, 0
    %p177 = por %p175, %p176
    %s179 = sadd.s32 %s178, 1
    %p182 = scmp.eq.s32.totalorder %s18, 9
    %p183 = scmp.ne.s32.totalorder %s178, %s180
    %p184 = scmp.eq.s32.totalorder %s18, 0
    %p185 = por %p183, %p184
    %p186 = scmp.ne.s32.totalorder %s178, %s180
    %p187 = scmp.eq.s32.totalorder %s23, 9
    %p188 = por %p186, %p187
    %p189 = scmp.ne.s32.totalorder %s180, %s181
    %p190 = scmp.eq.s32.totalorder %s23, 0
    %p191 = por %p189, %p190
    %p192 = scmp.ne.s32.totalorder %s180, %s181
    %p193 = scmp.eq.s32.totalorder %s24, 9
    %p194 = por %p192, %p193
    %p196 = scmp.ne.s32.totalorder %s181, %s195
    %p197 = scmp.eq.s32.totalorder %s24, 0
    %p198 = por %p196, %p197
    %s200 = sadd.s32 %s199, 1
    %p203 = scmp.eq.s32.totalorder %s18, 9
    %p204 = scmp.ne.s32.totalorder %s199, %s201
    %p205 = scmp.eq.s32.totalorder %s18, 0
    %p206 = por %p204, %p205
    %p207 = scmp.ne.s32.totalorder %s199, %s201
    %p208 = scmp.eq.s32.totalorder %s23, 9
    %p209 = por %p207, %p208
    %p210 = scmp.ne.s32.totalorder %s201, %s202
    %p211 = scmp.eq.s32.totalorder %s23, 0
    %p212 = por %p210, %p211
    %p213 = scmp.ne.s32.totalorder %s201, %s202
    %p214 = scmp.eq.s32.totalorder %s24, 9
    %p215 = por %p213, %p214
    %p217 = scmp.ne.s32.totalorder %s202, %s216
    %p218 = scmp.eq.s32.totalorder %s24, 0
    %p219 = por %p217, %p218
    %s221 = sadd.s32 %s220, 1
    %p224 = scmp.eq.s32.totalorder %s18, 9
    %p225 = scmp.ne.s32.totalorder %s220, %s222
    %p226 = scmp.eq.s32.totalorder %s18, 0
    %p227 = por %p225, %p226
    %p228 = scmp.ne.s32.totalorder %s220, %s222
    %p229 = scmp.eq.s32.totalorder %s23, 9
    %p230 = por %p228, %p229
    %p231 = scmp.ne.s32.totalorder %s222, %s223
    %p232 = scmp.eq.s32.totalorder %s23, 0
    %p233 = por %p231, %p232
    %p234 = scmp.ne.s32.totalorder %s222, %s223
    %p235 = scmp.eq.s32.totalorder %s24, 9
    %p236 = por %p234, %p235
    %p238 = scmp.ne.s32.totalorder %s223, %s237
    %p239 = scmp.eq.s32.totalorder %s24, 0
    %p240 = por %p238, %p239
    %s242 = sadd.s32 %s241, 1
    %p245 = scmp.eq.s32.totalorder %s18, 9
    %p246 = scmp.ne.s32.totalorder %s241, %s243
    %p247 = scmp.eq.s32.totalorder %s18, 0
    %p248 = por %p246, %p247
    %p249 = scmp.ne.s32.totalorder %s241, %s243
    %p250 = scmp.eq.s32.totalorder %s23, 9
    %p251 = por %p249, %p250
    %p252 = scmp.ne.s32.totalorder %s243, %s244
    %p253 = scmp.eq.s32.totalorder %s23, 0
    %p254 = por %p252, %p253
    %p255 = scmp.ne.s32.totalorder %s243, %s244
    %p256 = scmp.eq.s32.totalorder %s24, 9
    %p257 = por %p255, %p256
    %p259 = scmp.ne.s32.totalorder %s244, %s258
    %p260 = scmp.eq.s32.totalorder %s24, 0
    %p261 = por %p259, %p260
    %s263 = sadd.s32 %s262, 1
    %p266 = scmp.eq.s32.totalorder %s18, 9
    %p267 = scmp.ne.s32.totalorder %s262, %s264
    %p268 = scmp.eq.s32.totalorder %s18, 0
    %p269 = por %p267, %p268
    %p270 = scmp.ne.s32.totalorder %s262, %s264
    %p271 = scmp.eq.s32.totalorder %s23, 9
    %p272 = por %p270, %p271
    %p273 = scmp.ne.s32.totalorder %s264, %s265
    %p274 = scmp.eq.s32.totalorder %s23, 0
    %p275 = por %p273, %p274
    %p276 = scmp.ne.s32.totalorder %s264, %s265
    %p277 = scmp.eq.s32.totalorder %s24, 9
    %p278 = por %p276, %p277
    %p280 = scmp.ne.s32.totalorder %s265, %s279
    %p281 = scmp.eq.s32.totalorder %s24, 0
    %p282 = por %p280, %p281
    %s284 = sadd.s32 %s283, 1
    %p287 = scmp.eq.s32.totalorder %s18, 9
    %p288 = scmp.ne.s32.totalorder %s283, %s285
    %p289 = scmp.eq.s32.totalorder %s18, 0
    %p290 = por %p288, %p289
    %p291 = scmp.ne.s32.totalorder %s283, %s285
    %p292 = scmp.eq.s32.totalorder %s23, 9
    %p293 = por %p291, %p292
    %p294 = scmp.ne.s32.totalorder %s285, %s286
    %p295 = scmp.eq.s32.totalorder %s23, 0
    %p296 = por %p294, %p295
    %p297 = scmp.ne.s32.totalorder %s285, %s286
    %p298 = scmp.eq.s32.totalorder %s24, 9
    %p299 = por %p297, %p298
    %p301 = scmp.ne.s32.totalorder %s286, %s300
    %p302 = scmp.eq.s32.totalorder %s24, 0
    %p303 = por %p301, %p302
    %s304 = ssub.s32 %s25, %s37
    %s305 = ssub.s32 %s26, %s33
    %s306 = sor.u32 %s304, %s305
    %p307 = scmp.eq.s32.totalorder %s306, 0
    %s309 = sadd.s32 %s308, 1
    %s310 = scalar_select %p307, %s308, %s309
    %p313 = pneg %p307
    %p314 = scmp.eq.s32.totalorder %s18, 9
    %p315 = por %p313, %p314
    %p316 = scmp.ne.s32.totalorder %s308, %s311
    %p317 = scmp.eq.s32.totalorder %s18, 0
    %p318 = por %p316, %p317
    %p319 = scmp.ne.s32.totalorder %s308, %s311
    %p320 = scmp.eq.s32.totalorder %s23, 9
    %p321 = por %p319, %p320
    %p322 = scmp.ne.s32.totalorder %s311, %s312
    %p323 = scmp.eq.s32.totalorder %s23, 0
    %p324 = por %p322, %p323
    %p325 = scmp.ne.s32.totalorder %s311, %s312
    %p326 = scmp.eq.s32.totalorder %s24, 9
    %p327 = por %p325, %p326
    %p329 = scmp.ne.s32.totalorder %s312, %s328
    %p330 = scmp.eq.s32.totalorder %s24, 0
    %p331 = por %p329, %p330
    %p332 = scmp.le.s32.totalorder 1, %s18
    %p333 = scmp.lt.s32.totalorder %s18, 11
    %p334 = pnand %p332, %p333
    %p335 = pneg %p334
    // Predicated region
    $region9: #{deformable_encoder_layer.3} parent=5 // pred_check
      _
    $region10: #{deformable_encoder_layer.3} parent=5 // pred_check_branch
      %337 = sbr.rel (%p334) target = $region12
    $region11: #{deformable_encoder_layer.3} parent=5 // pred_region
      %s338 = ssub.s32 %s18, 1
      // Predicated region
      $region13: #{deformable_encoder_layer.3} parent=11 // pred_check
        %p339 = pneg %p107
      $region14: #{deformable_encoder_layer.3} parent=11 // pred_check_branch
        %341 = sbr.rel (%p339) target = $region16
      $region15: #{deformable_encoder_layer.3} parent=11 // pred_region
        _
      $region16: #{deformable_encoder_layer.3} parent=11 // pred_fallthru
        _
      // Predicated region
      $region17: #{deformable_encoder_layer.3} parent=11 // pred_check
        %p342 = pneg %p128
      $region18: #{deformable_encoder_layer.3} parent=11 // pred_check_branch
        %344 = sbr.rel (%p342) target = $region20
      $region19: #{deformable_encoder_layer.3} parent=11 // pred_region
        _
      $region20: #{deformable_encoder_layer.3} parent=11 // pred_fallthru
        _
      // Predicated region
      $region21: #{deformable_encoder_layer.3} parent=11 // pred_check
        %p345 = pneg %p149
      $region22: #{deformable_encoder_layer.3} parent=11 // pred_check_branch
        %347 = sbr.rel (%p345) target = $region24
      $region23: #{deformable_encoder_layer.3} parent=11 // pred_region
        _
      $region24: #{deformable_encoder_layer.3} parent=11 // pred_fallthru
        _
      // Predicated region
      $region25: #{deformable_encoder_layer.3} parent=11 // pred_check
        %p348 = pneg %p170
      $region26: #{deformable_encoder_layer.3} parent=11 // pred_check_branch
        %350 = sbr.rel (%p348) target = $region28
      $region27: #{deformable_encoder_layer.3} parent=11 // pred_region
        _
      $region28: #{deformable_encoder_layer.3} parent=11 // pred_fallthru
        _
      // Predicated region
      $region29: #{deformable_encoder_layer.3} parent=11 // pred_check
        %p351 = pneg %p191
      $region30: #{deformable_encoder_layer.3} parent=11 // pred_check_branch
        %353 = sbr.rel (%p351) target = $region32
      $region31: #{deformable_encoder_layer.3} parent=11 // pred_region
        _
      $region32: #{deformable_encoder_layer.3} parent=11 // pred_fallthru
        _
      // Predicated region
      $region33: #{deformable_encoder_layer.3} parent=11 // pred_check
        %p354 = pneg %p212
      $region34: #{deformable_encoder_layer.3} parent=11 // pred_check_branch
        %356 = sbr.rel (%p354) target = $region36
      $region35: #{deformable_encoder_layer.3} parent=11 // pred_region
        _
      $region36: #{deformable_encoder_layer.3} parent=11 // pred_fallthru
        _
      // Predicated region
      $region37: #{deformable_encoder_layer.3} parent=11 // pred_check
        %p357 = pneg %p233
      $region38: #{deformable_encoder_layer.3} parent=11 // pred_check_branch
        %359 = sbr.rel (%p357) target = $region40
      $region39: #{deformable_encoder_layer.3} parent=11 // pred_region
        _
      $region40: #{deformable_encoder_layer.3} parent=11 // pred_fallthru
        _
      // Predicated region
      $region41: #{deformable_encoder_layer.3} parent=11 // pred_check
        %p360 = pneg %p254
      $region42: #{deformable_encoder_layer.3} parent=11 // pred_check_branch
        %362 = sbr.rel (%p360) target = $region44
      $region43: #{deformable_encoder_layer.3} parent=11 // pred_region
        _
      $region44: #{deformable_encoder_layer.3} parent=11 // pred_fallthru
        _
      // Predicated region
      $region45: #{deformable_encoder_layer.3} parent=11 // pred_check
        %p363 = pneg %p275
      $region46: #{deformable_encoder_layer.3} parent=11 // pred_check_branch
        %365 = sbr.rel (%p363) target = $region48
      $region47: #{deformable_encoder_layer.3} parent=11 // pred_region
        _
      $region48: #{deformable_encoder_layer.3} parent=11 // pred_fallthru
        _
      // Predicated region
      $region49: #{deformable_encoder_layer.3} parent=11 // pred_check
        %p366 = pneg %p296
      $region50: #{deformable_encoder_layer.3} parent=11 // pred_check_branch
        %368 = sbr.rel (%p366) target = $region52
      $region51: #{deformable_encoder_layer.3} parent=11 // pred_region
        _
      $region52: #{deformable_encoder_layer.3} parent=11 // pred_fallthru
        _
    $region12: #{deformable_encoder_layer.3} parent=5 // pred_fallthru
      _
    %p369 = scmp.lt.s32.totalorder %s18, 10
    // Predicated region
    $region53: #{deformable_encoder_layer.3} parent=5 // pred_check
      %p370 = pneg %p369
    $region54: #{deformable_encoder_layer.3} parent=5 // pred_check_branch
      %372 = sbr.rel (%p370) target = $region56
    $region55: #{deformable_encoder_layer.3} parent=5 // pred_region
      // Predicated region
      $region57: #{deformable_encoder_layer.3} parent=55 // pred_check
        %p373 = pneg %p52
      $region58: #{deformable_encoder_layer.3} parent=55 // pred_check_branch
        %375 = sbr.rel (%p373) target = $region60
      $region59: #{deformable_encoder_layer.3} parent=55 // pred_region
        %s376 = smul.u32 2, %s26
        %p377 = scmp.lt.s32.totalorder %s25, 1
        %s378 = scalar_select %p377, %s25, 1
        %p379 = scmp.lt.s32.totalorder %s376, 9
        %s380 = scalar_select %p379, %s376, 9
        %s381 = smul.addr %s378, 10
        %s382 = sadd.s32 %s380, %s381
        %s383 = smul.addr %s382, 8
        %s384 = scalar_lea.vmem %s0, %s383
        %s385 = smul.u32 2, %s26
      $region60: #{deformable_encoder_layer.3} parent=55 // pred_fallthru
        _
      // Predicated region
      $region61: #{deformable_encoder_layer.3} parent=55 // pred_check
        %p386 = pneg %p80
      $region62: #{deformable_encoder_layer.3} parent=55 // pred_check_branch
        %388 = sbr.rel (%p386) target = $region64
      $region63: #{deformable_encoder_layer.3} parent=55 // pred_region
        %s389 = smul.u32 2, %s26
        %p390 = scmp.lt.s32.totalorder %s25, 1
        %s391 = scalar_select %p390, %s25, 1
        %p392 = scmp.lt.s32.totalorder %s389, 9
        %s393 = scalar_select %p392, %s389, 9
        %s394 = smul.addr %s391, 10
        %s395 = sadd.s32 %s393, %s394
        %s396 = smul.addr %s395, 8
        %s397 = scalar_lea.vmem %s1, %s396
        %s398 = smul.u32 2, %s26
      $region64: #{deformable_encoder_layer.3} parent=55 // pred_fallthru
        _
    $region56: #{deformable_encoder_layer.3} parent=5 // pred_fallthru
      _
    %p399 = scmp.le.s32.totalorder 1, %s18
    %p400 = scmp.lt.s32.totalorder %s18, 11
    %p401 = pnand %p399, %p400
    %p402 = pneg %p401
    // Predicated region
    $region65: #{deformable_encoder_layer.3} parent=5 // pred_check
      _
    $region66: #{deformable_encoder_layer.3} parent=5 // pred_check_branch
      %404 = sbr.rel (%p401) target = $region68
    $region67: #{deformable_encoder_layer.3} parent=5 // pred_region
      %s405 = ssub.s32 %s18, 1
      %s406 = smul.u32 2, %s28
      %p407 = scmp.lt.s32.totalorder %s27, 1
      %s408 = scalar_select %p407, %s27, 1
      %p409 = scmp.lt.s32.totalorder %s406, 9
      %s410 = scalar_select %p409, %s406, 9
      %s411 = smul.addr %s408, 10
      %s412 = sadd.s32 %s410, %s411
      %s413 = smul.addr %s412, 8
      %s414 = scalar_lea.vmem %s0, %s413
      %p415 = pneg %p58
      %p416 = pneg %p55
      %s417 = smul.u32 2, %s28
      %p418 = scmp.lt.s32.totalorder %s27, 1
      %s419 = scalar_select %p418, %s27, 1
      %p420 = scmp.lt.s32.totalorder %s417, 9
      %s421 = scalar_select %p420, %s417, 9
      %s422 = smul.addr %s419, 10
      %s423 = sadd.s32 %s421, %s422
      %s424 = smul.addr %s423, 8
      %s425 = scalar_lea.vmem %s1, %s424
      %p426 = pneg %p86
      %p427 = pneg %p83
      %p428 = pneg %p107
      %p429 = pneg %p104
      %p430 = pneg %p128
      %p431 = pneg %p125
      %p432 = pneg %p149
      %p433 = pneg %p146
      %p434 = pneg %p170
      %p435 = pneg %p167
      %p436 = pneg %p191
      %p437 = pneg %p188
      %p438 = pneg %p212
      %p439 = pneg %p209
      %p440 = pneg %p233
      %p441 = pneg %p230
      %p442 = pneg %p254
      %p443 = pneg %p251
      %p444 = pneg %p275
      %p445 = pneg %p272
      %p446 = pneg %p296
      %p447 = pneg %p293
      %p448 = pneg %p324
      %p449 = pneg %p321
      %s450 = smul.u32 2, %s28
      %p451 = scmp.lt.s32.totalorder %s27, 1
      %s452 = scalar_select %p451, %s27, 1
      %p453 = scmp.lt.s32.totalorder %s450, 9
      %s454 = scalar_select %p453, %s450, 9
      %s455 = smul.addr %s452, 10
      %s456 = sadd.s32 %s454, %s455
      %s457 = smul.addr %s456, 8
      %s458 = scalar_lea.vmem %s12, %s457
      %s459 = smul.u32 2, %s28
      %p460 = scmp.lt.s32.totalorder %s27, 1
      %s461 = scalar_select %p460, %s27, 1
      %p462 = scmp.lt.s32.totalorder %s459, 9
      %s463 = scalar_select %p462, %s459, 9
      %s464 = smul.addr %s461, 10
      %s465 = sadd.s32 %s463, %s464
      %s466 = smul.addr %s465, 8
      %s467 = scalar_lea.vmem %s0, %s466
      %s468 = smul.u32 2, %s28
      %s469 = smul.u32 2, %s28
      %p470 = scmp.lt.s32.totalorder %s27, 1
      %s471 = scalar_select %p470, %s27, 1
      %p472 = scmp.lt.s32.totalorder %s469, 9
      %s473 = scalar_select %p472, %s469, 9
      %s474 = smul.addr %s471, 10
      %s475 = sadd.s32 %s473, %s474
      %s476 = smul.addr %s475, 8
      %s477 = scalar_lea.vmem %s1, %s476
      %s478 = smul.u32 2, %s28
      %s479 = smul.u32 2, %s28
      %p480 = scmp.lt.s32.totalorder %s27, 1
      %s481 = scalar_select %p480, %s27, 1
      %p482 = scmp.lt.s32.totalorder %s479, 9
      %s483 = scalar_select %p482, %s479, 9
      %s484 = smul.addr %s481, 10
      %s485 = sadd.s32 %s483, %s484
      %s486 = smul.addr %s485, 8
      %s487 = scalar_lea.vmem %s12, %s486
      %s488 = smul.u32 2, %s28
      %v489 = vld [vmem:[%s477] sm:$0xff]
      %v490 = vld [vmem:[%s477 + $0x8] sm:$0xff]
      %v491 = vld [vmem:[%s2] sm:$0xff]
      %v492 = vld [vmem:[%s2 + $0x8] sm:$0xff]
      %v493 = vld [vmem:[%s2 + $0x10] sm:$0xff]
      %v494 = vld [vmem:[%s2 + $0x18] sm:$0xff]
      %v495 = vld [vmem:[%s3] sm:$0x1]
      %v497 = vperm.slane %v495, 0
      %vm499 = vcmask 261120
      %v501 = vsel %vm499, %v489, 0
      %v504 = vsel %vm499, %v490, 0
      %506 = vmatpush.msra.mxu0 0.0
      %507 = vmatpush.msra.mxu0 0.0
      %508 = vmatpush.msra.mxu0 0.0
      %509 = vmatpush.msra.mxu0 0.0
      %510 = vmatpush.msra.mxu0 0.0
      %511 = vmatpush.msra.mxu0 0.0
      %512 = vmatpush.msra.mxu0 0.0
      %513 = vmatpush.msra.mxu0 0.0
      %514 = vmatpush.msra.mxu0 0.0
      %515 = vmatpush.msra.mxu0 0.0
      %516 = vmatpush.msra.mxu0 0.0
      %517 = vmatpush.msra.mxu0 0.0
      %518 = vmatpush.msra.mxu0 %v494
      %519 = vmatpush.msra.mxu0 %v493
      %520 = vmatpush.msra.mxu0 %v492
      %521 = vmatpush.msra.mxu0 %v491
      %522 = vmatmul.f32.gmra.mxu0 %v501
      %v523 = vpop.f32.mrf.mxu0
      %v524 = vadd.f32 %v497, %v523
      %525 = vmatmul.f32.gmra.mxu0 %v504
      %v526 = vpop.f32.mrf.mxu0
      %v527 = vadd.f32 %v497, %v526
      %528 = vdwg.mxu0
      %v529 = vld [vmem:[%s467] sm:$0xff]
      %v530 = vld [vmem:[%s467 + $0x8] sm:$0xff]
      %v531 = vadd.f32 %v529, %v524
      %v532 = vadd.f32 %v530, %v527
      %v533 = vld [vmem:[%s4] sm:$0x1]
      %v534 = vld [vmem:[%s5] sm:$0x1]
      %v535 = vsel %vm499, %v531, 0.0
      %536 = vadd.xlane.f32.xlu0 %v535
      %v537 = vpop.xlane.xlu0 %536
      %v538 = vsel %vm499, %v532, 0.0
      %539 = vadd.xlane.f32.xlu0 %v538
      %v540 = vpop.xlane.xlu0 %539
      %v541 = vrcp.pop 32.0
      %v542 = vmul.f32 32.0, %v541
      %v543 = vsub.f32 1.0, %v542
      %v544 = vmul.f32 %v541, %v543
      %v545 = vadd.f32 %v541, %v544
      %vm546 = vweird.f32 %v541
      %v547 = vsel %vm546, %v541, %v545
      %v548 = vmul.f32 %v537, %v547
      %v549 = vmul.f32 %v540, %v547
      %v550 = vsub.f32 %v531, %v548
      %v551 = vsub.f32 %v532, %v549
      %v552 = vmul.f32 %v550, %v550
      %v553 = vmul.f32 %v551, %v551
      %v554 = vsel %vm499, %v552, 0.0
      %555 = vadd.xlane.f32.xlu0 %v554
      %v556 = vpop.xlane.xlu0 %555
      %v557 = vsel %vm499, %v553, 0.0
      %558 = vadd.xlane.f32.xlu0 %v557
      %v559 = vpop.xlane.xlu0 %558
      %v560 = vmul.f32 %v556, %v547
      %v561 = vmul.f32 %v559, %v547
      %v562 = vadd.f32 %v560, 1e-05
      %v563 = vadd.f32 %v561, 1e-05
      %v564 = vrsqrt.pop %v562
      %v565 = vmul.f32 %v564, %v562
      %v566 = vmul.f32 %v565, %v564
      %v567 = vmul.f32 0.5, %v566
      %v568 = vsub.f32 1.5, %v567
      %v569 = vmul.f32 %v564, %v568
      %vm570 = vweird.f32 %v562
      %vm571 = vweird.f32 %v564
      %vm572 = vmor %vm570, %vm571
      %v573 = vsel %vm572, %v564, %v569
      %v574 = vrsqrt.pop %v563
      %v575 = vmul.f32 %v574, %v563
      %v576 = vmul.f32 %v575, %v574
      %v577 = vmul.f32 0.5, %v576
      %v578 = vsub.f32 1.5, %v577
      %v579 = vmul.f32 %v574, %v578
      %vm580 = vweird.f32 %v563
      %vm581 = vweird.f32 %v574
      %vm582 = vmor %vm580, %vm581
      %v583 = vsel %vm582, %v574, %v579
      %v584 = vmul.f32 %v550, %v573
      %v585 = vmul.f32 %v551, %v583
      %v587 = vperm.slane %v533, 0
      %v589 = vmul.f32 %v584, %v587
      %v590 = vmul.f32 %v585, %v587
      %v592 = vperm.slane %v534, 0
      %v594 = vadd.f32 %v589, %v592
      %v595 = vadd.f32 %v590, %v592
      %v596 = vld [vmem:[%s9] sm:$0x1]
      %v598 = vperm.slane %v596, 0
      %v600 = vadd.f32 %v594, %v598
      %v601 = vadd.f32 %v595, %v598
      %v602 = vld [vmem:[%s6] sm:$0xff]
      %v603 = vld [vmem:[%s6 + $0x8] sm:$0xff]
      %v604 = vld [vmem:[%s6 + $0x10] sm:$0xff]
      %v605 = vld [vmem:[%s6 + $0x18] sm:$0xff]
      %v606 = vld [vmem:[%s7] sm:$0x1]
      %v608 = vperm.slane %v606, 0
      %v611 = vsel %vm499, %v594, 0
      %v614 = vsel %vm499, %v595, 0
      %616 = vmatpush.msra.mxu0 0.0
      %617 = vmatpush.msra.mxu0 0.0
      %618 = vmatpush.msra.mxu0 0.0
      %619 = vmatpush.msra.mxu0 0.0
      %620 = vmatpush.msra.mxu0 0.0
      %621 = vmatpush.msra.mxu0 0.0
      %622 = vmatpush.msra.mxu0 0.0
      %623 = vmatpush.msra.mxu0 0.0
      %624 = vmatpush.msra.mxu0 0.0
      %625 = vmatpush.msra.mxu0 0.0
      %626 = vmatpush.msra.mxu0 0.0
      %627 = vmatpush.msra.mxu0 0.0
      %628 = vmatpush.msra.mxu0 %v605
      %629 = vmatpush.msra.mxu0 %v604
      %630 = vmatpush.msra.mxu0 %v603
      %631 = vmatpush.msra.mxu0 %v602
      %632 = vmatmul.f32.gmra.mxu0 %v611
      %v633 = vpop.f32.mrf.mxu0
      %v634 = vadd.f32 %v608, %v633
      %635 = vmatmul.f32.gmra.mxu0 %v614
      %v636 = vpop.f32.mrf.mxu0
      %v637 = vadd.f32 %v608, %v636
      %638 = vdwg.mxu0
      %v639 = vmax.f32 %v634, 0.0
      %v640 = vmax.f32 %v637, 0.0
      %v641 = vld [vmem:[%s8] sm:$0xff]
      %v642 = vld [vmem:[%s8 + $0x8] sm:$0xff]
      %v643 = vld [vmem:[%s8 + $0x10] sm:$0xff]
      %v644 = vld [vmem:[%s8 + $0x18] sm:$0xff]
      %v645 = vld [vmem:[%s8 + $0x20] sm:$0xff]
      %v646 = vld [vmem:[%s8 + $0x28] sm:$0xff]
      %v647 = vld [vmem:[%s8 + $0x30] sm:$0xff]
      %v648 = vld [vmem:[%s8 + $0x38] sm:$0xff]
      %vm649 = vcmask 523264
      %v651 = vsel %vm649, %v639, 0
      %v654 = vsel %vm649, %v640, 0
      %656 = vmatpush.msra.mxu0 0.0
      %657 = vmatpush.msra.mxu0 0.0
      %658 = vmatpush.msra.mxu0 0.0
      %659 = vmatpush.msra.mxu0 0.0
      %660 = vmatpush.msra.mxu0 0.0
      %661 = vmatpush.msra.mxu0 0.0
      %662 = vmatpush.msra.mxu0 0.0
      %663 = vmatpush.msra.mxu0 0.0
      %664 = vmatpush.msra.mxu0 %v648
      %665 = vmatpush.msra.mxu0 %v647
      %666 = vmatpush.msra.mxu0 %v646
      %667 = vmatpush.msra.mxu0 %v645
      %668 = vmatpush.msra.mxu0 %v644
      %669 = vmatpush.msra.mxu0 %v643
      %670 = vmatpush.msra.mxu0 %v642
      %671 = vmatpush.msra.mxu0 %v641
      %672 = vmatmul.f32.gmra.mxu0 %v651
      %v673 = vpop.f32.mrf.mxu0
      %v674 = vadd.f32 0.0, %v673
      %675 = vmatmul.f32.gmra.mxu0 %v654
      %v676 = vpop.f32.mrf.mxu0
      %v677 = vadd.f32 0.0, %v676
      %678 = vdwg.mxu0
      %v679 = vadd.f32 %v600, %v674
      %v680 = vadd.f32 %v601, %v677
      %v681 = vld [vmem:[%s10] sm:$0x1]
      %v682 = vld [vmem:[%s11] sm:$0x1]
      %v683 = vsel %vm499, %v679, 0.0
      %684 = vadd.xlane.f32.xlu0 %v683
      %v685 = vpop.xlane.xlu0 %684
      %v686 = vsel %vm499, %v680, 0.0
      %687 = vadd.xlane.f32.xlu0 %v686
      %v688 = vpop.xlane.xlu0 %687
      %v689 = vmul.f32 %v685, %v547
      %v690 = vmul.f32 %v688, %v547
      %v691 = vsub.f32 %v679, %v689
      %v692 = vsub.f32 %v680, %v690
      %v693 = vmul.f32 %v691, %v691
      %v694 = vmul.f32 %v692, %v692
      %v695 = vsel %vm499, %v693, 0.0
      %696 = vadd.xlane.f32.xlu0 %v695
      %v697 = vpop.xlane.xlu0 %696
      %v698 = vsel %vm499, %v694, 0.0
      %699 = vadd.xlane.f32.xlu0 %v698
      %v700 = vpop.xlane.xlu0 %699
      %v701 = vmul.f32 %v697, %v547
      %v702 = vmul.f32 %v700, %v547
      %v703 = vadd.f32 %v701, 1e-05
      %v704 = vadd.f32 %v702, 1e-05
      %v705 = vrsqrt.pop %v703
      %v706 = vmul.f32 %v705, %v703
      %v707 = vmul.f32 %v706, %v705
      %v708 = vmul.f32 0.5, %v707
      %v709 = vsub.f32 1.5, %v708
      %v710 = vmul.f32 %v705, %v709
      %vm711 = vweird.f32 %v703
      %vm712 = vweird.f32 %v705
      %vm713 = vmor %vm711, %vm712
      %v714 = vsel %vm713, %v705, %v710
      %v715 = vrsqrt.pop %v704
      %v716 = vmul.f32 %v715, %v704
      %v717 = vmul.f32 %v716, %v715
      %v718 = vmul.f32 0.5, %v717
      %v719 = vsub.f32 1.5, %v718
      %v720 = vmul.f32 %v715, %v719
      %vm721 = vweird.f32 %v704
      %vm722 = vweird.f32 %v715
      %vm723 = vmor %vm721, %vm722
      %v724 = vsel %vm723, %v715, %v720
      %v725 = vmul.f32 %v691, %v714
      %v726 = vmul.f32 %v692, %v724
      %v728 = vperm.slane %v681, 0
      %v730 = vmul.f32 %v725, %v728
      %v731 = vmul.f32 %v726, %v728
      %v733 = vperm.slane %v682, 0
      %v735 = vadd.f32 %v730, %v733
      %v736 = vadd.f32 %v731, %v733
      %737 = vst.msk [vmem:[%s487] sm:$0xff] %vm499, %v735
      %738 = vst.msk [vmem:[%s487 + $0x8] sm:$0xff] %vm499, %v736
      %s739 = smul.u32 2, %s28
      %p740 = scmp.lt.s32.totalorder %s27, 1
      %s741 = scalar_select %p740, %s27, 1
      %p742 = scmp.lt.s32.totalorder %s739, 9
      %s743 = scalar_select %p742, %s739, 9
      %s744 = smul.addr %s741, 10
      %s745 = sadd.s32 %s743, %s744
      %s746 = smul.addr %s745, 8
      %s747 = scalar_lea.vmem %s12, %s746
      // Predicated region
      $region69: #{deformable_encoder_layer.3} parent=67 // pred_check
        %p748 = pneg %p321
      $region70: #{deformable_encoder_layer.3} parent=67 // pred_check_branch
        %750 = sbr.rel (%p748) target = $region72
      $region71: #{deformable_encoder_layer.3} parent=67 // pred_region
        %s751 = smul.u32 2, %s28
      $region72: #{deformable_encoder_layer.3} parent=67 // pred_fallthru
        _
    $region68: #{deformable_encoder_layer.3} parent=5 // pred_fallthru
      _
    %p752 = scmp.le.s32.totalorder 2, %s18
    // Predicated region
    $region73: #{deformable_encoder_layer.3} parent=5 // pred_check
      %p753 = pneg %p752
    $region74: #{deformable_encoder_layer.3} parent=5 // pred_check_branch
      %755 = sbr.rel (%p753) target = $region76
    $region75: #{deformable_encoder_layer.3} parent=5 // pred_region
      %s756 = ssub.s32 %s18, 2
      // Predicated region
      $region77: #{deformable_encoder_layer.3} parent=75 // pred_check
        %p757 = pneg %p327
      $region78: #{deformable_encoder_layer.3} parent=75 // pred_check_branch
        %759 = sbr.rel (%p757) target = $region80
      $region79: #{deformable_encoder_layer.3} parent=75 // pred_region
        %s760 = smul.u32 2, %s30
        %p761 = scmp.lt.s32.totalorder %s29, 1
        %s762 = scalar_select %p761, %s29, 1
        %p763 = scmp.lt.s32.totalorder %s760, 9
        %s764 = scalar_select %p763, %s760, 9
        %s765 = smul.addr %s762, 10
        %s766 = sadd.s32 %s764, %s765
        %s767 = smul.addr %s766, 8
        %s768 = scalar_lea.vmem %s12, %s767
      $region80: #{deformable_encoder_layer.3} parent=75 // pred_fallthru
        _
    $region76: #{deformable_encoder_layer.3} parent=5 // pred_fallthru
      _
  $region6: #{deformable_encoder_layer.3} parent=0 // loop_footer
    %s22 = sadd.s32 1, %s18
  $region7: #{deformable_encoder_layer.3} parent=0 // loop_footer_branch
    %17 = sbr.rel target = $region3
  $region8: #{deformable_encoder_layer.3} parent=0 // loop_exit
    _

</llo_original>
